<compile_context>
chip_gen: v6e
topology: v6e:2x2x1
jax: 0.10.0
libtpu: 0.0.40
codegen_flags: <defaults>
</compile_context>

<pallas_src>
import math

import jax
import jax.numpy as jnp
from jax import lax
from jax.experimental import pallas as pl
from jax.experimental.pallas import tpu as pltpu


# =====================  helpers  =====================

def _pick_tm(M, cap=512):
    """Row-tile: multiple of 16, divides M, and gives >=2 grid steps (v7x has 2 TCs)."""
    for tm in (cap, 256, 128, 64, 32, 16):
        if tm <= M // 2 and M % tm == 0:
            return tm
    return M


# =====================  Pallas kernels  =====================

def _bn_mm_bn_kernel(x_ref, s1_ref, b1_ref, w_ref, s2_ref, b2_ref, o_ref):
    # bn1+relu prologue -> 1x1 conv (bf16 MXU, f32 acc) -> bn2+relu epilogue
    a = jnp.maximum(x_ref[...] * s1_ref[...] + b1_ref[...], 0.0)
    y = jnp.dot(a.astype(jnp.bfloat16), w_ref[...],
                preferred_element_type=jnp.float32)
    o_ref[...] = jnp.maximum(y * s2_ref[...] + b2_ref[...], 0.0).astype(o_ref.dtype)


def bn_conv1x1_bn(x2d, bn1, w1, bn2):
    M, Cin = x2d.shape
    Cout = w1.shape[1]
    tm = _pick_tm(M)
    s1, b1 = bn1
    s2, b2 = bn2
    return pl.pallas_call(
        _bn_mm_bn_kernel,
        out_shape=jax.ShapeDtypeStruct((M, Cout), jnp.bfloat16),
        grid=(M // tm,),
        in_specs=[pl.BlockSpec((tm, Cin), lambda i: (i, 0)),
                  pl.BlockSpec((1, Cin), lambda i: (0, 0)),
                  pl.BlockSpec((1, Cin), lambda i: (0, 0)),
                  pl.BlockSpec((Cin, Cout), lambda i: (0, 0)),
                  pl.BlockSpec((1, Cout), lambda i: (0, 0)),
                  pl.BlockSpec((1, Cout), lambda i: (0, 0))],
        out_specs=pl.BlockSpec((tm, Cout), lambda i: (i, 0)),
        compiler_params=pltpu.CompilerParams(
            dimension_semantics=("parallel",)),
    )(x2d, s1, b1, w1, s2, b2)


def _mm_add_kernel(a_ref, w_ref, r_ref, o_ref):
    # 1x1 conv + fused residual add epilogue
    y = jnp.dot(a_ref[...], w_ref[...], preferred_element_type=jnp.float32)
    o_ref[...] = (y + r_ref[...]).astype(o_ref.dtype)


def conv1x1_add(a2d, w, res2d):
    M, K = a2d.shape
    Cout = w.shape[1]
    tm = _pick_tm(M)
    return pl.pallas_call(
        _mm_add_kernel,
        out_shape=jax.ShapeDtypeStruct((M, Cout), jnp.float32),
        grid=(M // tm,),
        in_specs=[pl.BlockSpec((tm, K), lambda i: (i, 0)),
                  pl.BlockSpec((K, Cout), lambda i: (0, 0)),
                  pl.BlockSpec((tm, Cout), lambda i: (i, 0))],
        out_specs=pl.BlockSpec((tm, Cout), lambda i: (i, 0)),
        compiler_params=pltpu.CompilerParams(
            dimension_semantics=("parallel",)),
    )(a2d, w, res2d)


def _mm_ds_add_kernel(a_ref, w_ref, x_ref, wd_ref, o_ref):
    # 1x1 conv + fused downsample 1x1 conv (same output tile) + add
    y = jnp.dot(a_ref[...], w_ref[...], preferred_element_type=jnp.float32)
    y = y + jnp.dot(x_ref[...].astype(jnp.bfloat16), wd_ref[...],
                    preferred_element_type=jnp.float32)
    o_ref[...] = y.astype(o_ref.dtype)


def conv1x1_ds_add(a2d, w, xds2d, wd):
    M, K = a2d.shape
    Cout = w.shape[1]
    Cin = xds2d.shape[1]
    tm = _pick_tm(M)
    return pl.pallas_call(
        _mm_ds_add_kernel,
        out_shape=jax.ShapeDtypeStruct((M, Cout), jnp.float32),
        grid=(M // tm,),
        in_specs=[pl.BlockSpec((tm, K), lambda i: (i, 0)),
                  pl.BlockSpec((K, Cout), lambda i: (0, 0)),
                  pl.BlockSpec((tm, Cin), lambda i: (i, 0)),
                  pl.BlockSpec((Cin, Cout), lambda i: (0, 0))],
        out_specs=pl.BlockSpec((tm, Cout), lambda i: (i, 0)),
        compiler_params=pltpu.CompilerParams(
            dimension_semantics=("parallel",)),
    )(a2d, w, xds2d, wd)


def _make_conv3x3_kernel(stride, Ho, Wo, Hq, Cin, Cout):
    def kernel(x_ref, w_ref, s_ref, b_ref, o_ref, acc_ref):
        # x_ref: (1, stride*stride*Hq, Wq, Cin) bf16 padded (+parity split) slab
        # w_ref: (9, Cin, Cout) bf16 ; acc_ref: (Ho*Wo, Cout) f32 scratch
        for t in range(9):
            kh, kw = t // 3, t % 3
            ph, qh = kh % stride, kh // stride
            pw, qw = kw % stride, kw // stride
            row0 = (ph * stride + pw) * Hq + qh
            win = x_ref[0, row0:row0 + Ho, qw:qw + Wo, :]
            # widen to f32 so the (Ho,Wo)->(Ho*Wo) collapse stays on an
            # (8,128)-friendly layout (Wo is 8/16/32), then repack for the MXU.
            a = win.astype(jnp.float32).reshape(Ho * Wo, Cin).astype(jnp.bfloat16)
            contrib = jnp.dot(a, w_ref[t], preferred_element_type=jnp.float32)
            if t == 0:
                acc_ref[...] = contrib
            else:
                acc_ref[...] += contrib
        y = acc_ref[...] * s_ref[...] + b_ref[...]
        o_ref[0] = jnp.maximum(y, 0.0).astype(o_ref.dtype)
    return kernel


def conv3x3_bn_relu(x_nhwc, w2, bn3, stride):
    """3x3 conv (padding=1, given stride) with bn3+relu epilogue.

    im2col lives inside the kernel as a 9-tap accumulating matmul; stride-2 is
    handled by a parity split of the padded slab so only static slices are
    needed in-kernel (no 9x HBM patch materialization).
    """
    N, H, W, Cin = x_nhwc.shape
    Cout = w2.shape[2]
    s = stride
    Ho = (H + 2 - 3) // s + 1
    Wo = (W + 2 - 3) // s + 1
    Hq = -(-(H + 2) // s)
    Wq = -(-(W + 2) // s)
    xp = jnp.pad(x_nhwc, ((0, 0), (1, s * Hq - H - 1), (1, s * Wq - W - 1), (0, 0)))
    xv = (xp.reshape(N, Hq, s, Wq, s, Cin)
            .transpose(0, 2, 4, 1, 3, 5)
            .reshape(N, s * s * Hq, Wq, Cin))
    s3, b3 = bn3
    out = pl.pallas_call(
        _make_conv3x3_kernel(s, Ho, Wo, Hq, Cin, Cout),
        out_shape=jax.ShapeDtypeStruct((N, Ho * Wo, Cout), jnp.bfloat16),
        grid=(N,),
        in_specs=[pl.BlockSpec((1, s * s * Hq, Wq, Cin),
                               lambda n: (n, 0, 0, 0)),
                  pl.BlockSpec((9, Cin, Cout), lambda n: (0, 0, 0)),
                  pl.BlockSpec((1, Cout), lambda n: (0, 0)),
                  pl.BlockSpec((1, Cout), lambda n: (0, 0))],
        out_specs=pl.BlockSpec((1, Ho * Wo, Cout), lambda n: (n, 0, 0)),
        scratch_shapes=[pltpu.VMEM((Ho * Wo, Cout), jnp.float32)],
        compiler_params=pltpu.CompilerParams(
            dimension_semantics=("parallel",)),
    )(xv, w2, s3, b3)
    return out.reshape(N, Ho, Wo, Cout)


def _bn_relu_avgpool_kernel(x_ref, s_ref, b_ref, o_ref):
    y = jnp.maximum(x_ref[...] * s_ref[...] + b_ref[...], 0.0)
    o_ref[...] = jnp.mean(y, axis=1, keepdims=True)


def bn_relu_avgpool(x3d, scale, bias):
    # fused final BN + ReLU + global average pool (AvgPool2d(8) on an 8x8 map)
    N, HW, C = x3d.shape
    out = pl.pallas_call(
        _bn_relu_avgpool_kernel,
        out_shape=jax.ShapeDtypeStruct((N, 1, C), jnp.float32),
    )(x3d, scale, bias)
    return out.reshape(N, C)


# =====================  model forward  =====================

def bottleneck_forward(x, p):
    # pre-activation Bottleneck (unpruned model: channel_selection == identity)
    N, H, W, Cin = x.shape
    stride = p['stride']
    # (1) bn1+relu -> conv1 (1x1) -> bn2+relu, one fused kernel
    h1 = bn_conv1x1_bn(x.reshape(N * H * W, Cin), p['bn1'], p['w1'], p['bn2'])
    h1 = h1.reshape(N, H, W, p['w1'].shape[1])
    # (2) conv2 (3x3, pad=1, stride) -> bn3+relu, in-kernel im2col
    h2 = conv3x3_bn_relu(h1, p['w2'], p['bn3'], stride)
    _, Ho, Wo, C2 = h2.shape
    Cout = p['w3'].shape[1]
    # (3) conv3 (1x1) + residual (and downsample conv) fused into one kernel
    if p['wd'] is None:
        out = conv1x1_add(h2.reshape(N * Ho * Wo, C2), p['w3'],
                          x.reshape(N * H * W, Cin))
    else:
        # TODO(synk): the stride-2 residual gather x[:, ::s, ::s, :] is left to XLA
        xds = x[:, ::stride, ::stride, :].reshape(N * Ho * Wo, Cin)
        out = conv1x1_ds_add(h2.reshape(N * Ho * Wo, C2), p['w3'], xds, p['wd'])
    return out.reshape(N, Ho, Wo, Cout)


def presnet_forward(x_nchw, params):
    x = jnp.transpose(x_nchw, (0, 2, 3, 1)).astype(jnp.float32)   # NCHW -> NHWC
    # stem conv (3->64, K=27): left to XLA; a 27-wide contraction underfills the
    # 128-lane MXU and is negligible FLOPs.
    x = lax.conv_general_dilated(
        x.astype(jnp.bfloat16), params['conv1_stem'], (1, 1), ((1, 1), (1, 1)),
        dimension_numbers=('NHWC', 'HWIO', 'NHWC'),
        preferred_element_type=jnp.float32)
    for blk in params['blocks']:
        x = bottleneck_forward(x, blk)
    N, H, W, C = x.shape
    pooled = bn_relu_avgpool(x.reshape(N, H * W, C), *params['bn'])
    # FC is (2,256)x(256,10): plain jnp (a pallas_call here would be pure launch
    # overhead with heavily masked 10-lane stores).
    return pooled @ params['fc_w'] + params['fc_b']


# =====================  deterministic parameter construction  =====================

def _conv1x1_init(key, cin, cout):
    std = math.sqrt(2.0 / (1 * 1 * cout))                 # matches normal_(0, sqrt(2/n))
    return (std * jax.random.normal(key, (cin, cout), jnp.float32)).astype(jnp.bfloat16)


def _conv3x3_init(key, cin, cout):
    std = math.sqrt(2.0 / (3 * 3 * cout))
    return (std * jax.random.normal(key, (9, cin, cout), jnp.float32)).astype(jnp.bfloat16)


def _bn_init(c, eps=1e-5):
    # BatchNorm2d in eval mode: weight=0.5, bias=0, running_mean=0, running_var=1
    # TODO(synk): training-mode batch statistics not modeled; eval-mode affine is used.
    gamma = jnp.full((1, c), 0.5, jnp.float32)
    beta = jnp.zeros((1, c), jnp.float32)
    mean = jnp.zeros((1, c), jnp.float32)
    var = jnp.ones((1, c), jnp.float32)
    scale = gamma / jnp.sqrt(var + eps)
    return scale, beta - mean * scale


def make_params(key, depth=11, num_classes=10):
    assert (depth - 2) % 9 == 0, 'depth should be 9n+2'
    n = (depth - 2) // 9
    cfg = [[64, 64, 64], [64, 64, 64] * (n - 1), [64, 64, 64],
           [128, 128, 128] * (n - 1), [128, 128, 128],
           [256, 256, 256] * (n - 1), [256]]
    cfg = [c for sub in cfg for c in sub]

    keys = iter(jax.random.split(key, 64))
    std_stem = math.sqrt(2.0 / (3 * 3 * 64))
    params = {'conv1_stem': (std_stem * jax.random.normal(
        next(keys), (3, 3, 3, 64), jnp.float32)).astype(jnp.bfloat16)}

    blocks = []
    inplanes = [64]

    def make_layer(planes, blocks_n, layer_cfg, stride):
        for i in range(blocks_n):
            bcfg = layer_cfg[3 * i: 3 * (i + 1)]
            s = stride if i == 0 else 1
            need_ds = i == 0 and (s != 1 or inplanes[0] != planes)
            blk = {
                'stride': s,
                'bn1': _bn_init(inplanes[0]),
                'w1': _conv1x1_init(next(keys), bcfg[0], bcfg[1]),
                'bn2': _bn_init(bcfg[1]),
                'w2': _conv3x3_init(next(keys), bcfg[1], bcfg[2]),
                'bn3': _bn_init(bcfg[2]),
                'w3': _conv1x1_init(next(keys), bcfg[2], planes),
                'wd': (_conv1x1_init(next(keys), inplanes[0], planes)
                       if need_ds else None),
            }
            blocks.append(blk)
            inplanes[0] = planes

    make_layer(64, n, cfg[0:3 * n], 1)
    make_layer(128, n, cfg[3 * n:6 * n], 2)
    make_layer(256, n, cfg[6 * n:9 * n], 2)

    params['blocks'] = blocks
    params['bn'] = _bn_init(256)
    fan_in = cfg[-1]
    bound = 1.0 / math.sqrt(fan_in)
    params['fc_w'] = jax.random.uniform(next(keys), (fan_in, num_classes),
                                        jnp.float32, -bound, bound)
    params['fc_b'] = jax.random.uniform(next(keys), (num_classes,),
                                        jnp.float32, -bound, bound)
    return params


# =====================  pure-JAX reference for sanity checking  =====================

def ref_forward(x_nchw, params):
    x = jnp.transpose(x_nchw, (0, 2, 3, 1)).astype(jnp.float32)

    def conv(x, w_hwio, stride, pad):
        # same numerical regime as the kernels: bf16 operands, f32 accumulation
        return lax.conv_general_dilated(
            x.astype(jnp.bfloat16), w_hwio.astype(jnp.bfloat16),
            (stride, stride), pad,
            dimension_numbers=('NHWC', 'HWIO', 'NHWC'),
            preferred_element_type=jnp.float32)

    def bnrelu(x, sb):
        s, b = sb
        return jnp.maximum(x * s + b, 0.0)

    x = conv(x, params['conv1_stem'], 1, ((1, 1), (1, 1)))
    for p in params['blocks']:
        res = x
        out = bnrelu(x, p['bn1'])
        ci, co = p['w1'].shape
        out = conv(out, p['w1'].reshape(1, 1, ci, co), 1, 'VALID')
        out = bnrelu(out, p['bn2'])
        _, ci2, co2 = p['w2'].shape
        out = conv(out, p['w2'].reshape(3, 3, ci2, co2), p['stride'], ((1, 1), (1, 1)))
        out = bnrelu(out, p['bn3'])
        ci3, co3 = p['w3'].shape
        out = conv(out, p['w3'].reshape(1, 1, ci3, co3), 1, 'VALID')
        if p['wd'] is not None:
            cid, cod = p['wd'].shape
            res = conv(x, p['wd'].reshape(1, 1, cid, cod), p['stride'], 'VALID')
        x = out + res
    x = bnrelu(x, params['bn'])
    x = jnp.mean(x, axis=(1, 2))
    return x @ params['fc_w'] + params['fc_b']


if __name__ == "__main__":
    key = jax.random.PRNGKey(0)
    pkey, xkey = jax.random.split(key)

    # depth=11 is the smallest legal presnet (n=1 Bottleneck per stage);
    # CIFAR-shaped input NCHW (2, 3, 32, 32) — AvgPool2d(8) requires 32x32 input.
    params = make_params(pkey, depth=11, num_classes=10)
    x = jax.random.normal(xkey, (2, 3, 32, 32), jnp.float32)

    out = jax.block_until_ready(presnet_forward(x, params))
    assert out.shape == (2, 10), out.shape

    ref = jax.block_until_ready(ref_forward(x, params))
    err = float(jnp.max(jnp.abs(out - ref)))
    assert jnp.allclose(out, ref, atol=2e-2, rtol=2e-2), f"max abs err {err}"

    print("KERNEL_OK")
</pallas_src>

<mosaic_0001>
module attributes {stable_mosaic.version = 11 : i64} {
  func.func @_bn_mm_bn_kernel(%arg0: i32, %arg1: memref<512x64xf32, #tpu.memory_space<vmem>>, %arg2: memref<1x64xf32, #tpu.memory_space<vmem>>, %arg3: memref<1x64xf32, #tpu.memory_space<vmem>>, %arg4: memref<64x64xbf16, #tpu.memory_space<vmem>>, %arg5: memref<1x64xf32, #tpu.memory_space<vmem>>, %arg6: memref<1x64xf32, #tpu.memory_space<vmem>>, %arg7: memref<512x64xbf16, #tpu.memory_space<vmem>>) attributes {dimension_semantics = [#tpu.dimension_semantics<parallel>], iteration_bounds = array<i64: 4>, scalar_prefetch = 0 : i64, scratch_operands = 0 : i64, tpu.core_type = #tpu.core_type<tc>, window_params = [{transform_indices = @transform_0, window_bounds = array<i64: 512, 64>}, {pipeline_mode = #tpu.pipeline_mode<synchronous>, transform_indices = @transform_1, window_bounds = array<i64: 1, 64>}, {pipeline_mode = #tpu.pipeline_mode<synchronous>, transform_indices = @transform_2, window_bounds = array<i64: 1, 64>}, {pipeline_mode = #tpu.pipeline_mode<synchronous>, transform_indices = @transform_3, window_bounds = array<i64: 64, 64>}, {pipeline_mode = #tpu.pipeline_mode<synchronous>, transform_indices = @transform_4, window_bounds = array<i64: 1, 64>}, {pipeline_mode = #tpu.pipeline_mode<synchronous>, transform_indices = @transform_5, window_bounds = array<i64: 1, 64>}, {transform_indices = @transform_6, window_bounds = array<i64: 512, 64>}]} {
    %c0 = arith.constant 0 : index
    %c0_0 = arith.constant 0 : index
    %0 = vector.load %arg1[%c0, %c0_0] : memref<512x64xf32, #tpu.memory_space<vmem>>, vector<512x64xf32>
    %c0_1 = arith.constant 0 : index
    %c0_2 = arith.constant 0 : index
    %1 = vector.load %arg2[%c0_1, %c0_2] : memref<1x64xf32, #tpu.memory_space<vmem>>, vector<1x64xf32>
    %2 = vector.broadcast %1 : vector<1x64xf32> to vector<512x64xf32>
    %3 = arith.mulf %0, %2 : vector<512x64xf32>
    %c0_3 = arith.constant 0 : index
    %c0_4 = arith.constant 0 : index
    %4 = vector.load %arg3[%c0_3, %c0_4] : memref<1x64xf32, #tpu.memory_space<vmem>>, vector<1x64xf32>
    %5 = vector.broadcast %4 : vector<1x64xf32> to vector<512x64xf32>
    %6 = arith.addf %3, %5 : vector<512x64xf32>
    %cst = arith.constant 0.000000e+00 : f32
    %7 = vector.broadcast %cst : f32 to vector<512x64xf32>
    %8 = arith.maximumf %6, %7 : vector<512x64xf32>
    %9 = arith.truncf %8 : vector<512x64xf32> to vector<512x64xbf16>
    %c0_5 = arith.constant 0 : index
    %c0_6 = arith.constant 0 : index
    %10 = vector.load %arg4[%c0_5, %c0_6] : memref<64x64xbf16, #tpu.memory_space<vmem>>, vector<64x64xbf16>
    %cst_7 = arith.constant dense<0.000000e+00> : vector<512x64xf32>
    %11 = tpu.matmul %9, %10, %cst_7 {dimension_numbers = #tpu.dot_dimension_numbers<[1], [0], [0], [1], [0, 0, 1, 1], [], []>} : vector<512x64xbf16>, vector<64x64xbf16>, vector<512x64xf32> -> vector<512x64xf32>
    %c0_8 = arith.constant 0 : index
    %c0_9 = arith.constant 0 : index
    %12 = vector.load %arg5[%c0_8, %c0_9] : memref<1x64xf32, #tpu.memory_space<vmem>>, vector<1x64xf32>
    %13 = vector.broadcast %12 : vector<1x64xf32> to vector<512x64xf32>
    %14 = arith.mulf %11, %13 : vector<512x64xf32>
    %c0_10 = arith.constant 0 : index
    %c0_11 = arith.constant 0 : index
    %15 = vector.load %arg6[%c0_10, %c0_11] : memref<1x64xf32, #tpu.memory_space<vmem>>, vector<1x64xf32>
    %16 = vector.broadcast %15 : vector<1x64xf32> to vector<512x64xf32>
    %17 = arith.addf %14, %16 : vector<512x64xf32>
    %cst_12 = arith.constant 0.000000e+00 : f32
    %18 = vector.broadcast %cst_12 : f32 to vector<512x64xf32>
    %19 = arith.maximumf %17, %18 : vector<512x64xf32>
    %20 = arith.truncf %19 : vector<512x64xf32> to vector<512x64xbf16>
    %c0_13 = arith.constant 0 : index
    %c0_14 = arith.constant 0 : index
    %21 = vector.load %arg7[%c0_13, %c0_14] : memref<512x64xbf16, #tpu.memory_space<vmem>>, vector<512x64xbf16>
    tpu.vector_store %arg7[%c0_13, %c0_14], %20 {strides = array<i32>} : memref<512x64xbf16, #tpu.memory_space<vmem>>, vector<512x64xbf16>,
    return
  }
  func.func @transform_0(%arg0: i32) -> (i32, i32) {
    %c0_i32 = arith.constant 0 : i32
    %c0_i32_0 = arith.constant 0 : i32
    return %arg0, %c0_i32 : i32, i32
  }
  func.func @transform_1(%arg0: i32) -> (i32, i32) {
    %c0_i32 = arith.constant 0 : i32
    %c0_i32_0 = arith.constant 0 : i32
    %c0_i32_1 = arith.constant 0 : i32
    return %c0_i32, %c0_i32_0 : i32, i32
  }
  func.func @transform_2(%arg0: i32) -> (i32, i32) {
    %c0_i32 = arith.constant 0 : i32
    %c0_i32_0 = arith.constant 0 : i32
    %c0_i32_1 = arith.constant 0 : i32
    return %c0_i32, %c0_i32_0 : i32, i32
  }
  func.func @transform_3(%arg0: i32) -> (i32, i32) {
    %c0_i32 = arith.constant 0 : i32
    %c0_i32_0 = arith.constant 0 : i32
    %c0_i32_1 = arith.constant 0 : i32
    return %c0_i32, %c0_i32_0 : i32, i32
  }
  func.func @transform_4(%arg0: i32) -> (i32, i32) {
    %c0_i32 = arith.constant 0 : i32
    %c0_i32_0 = arith.constant 0 : i32
    %c0_i32_1 = arith.constant 0 : i32
    return %c0_i32, %c0_i32_0 : i32, i32
  }
  func.func @transform_5(%arg0: i32) -> (i32, i32) {
    %c0_i32 = arith.constant 0 : i32
    %c0_i32_0 = arith.constant 0 : i32
    %c0_i32_1 = arith.constant 0 : i32
    return %c0_i32, %c0_i32_0 : i32, i32
  }
  func.func @transform_6(%arg0: i32) -> (i32, i32) {
    %c0_i32 = arith.constant 0 : i32
    %c0_i32_0 = arith.constant 0 : i32
    return %arg0, %c0_i32 : i32, i32
  }
}

</mosaic_0001>

<llo_original>
// kernel: tpu_custom_call.1
$region0: #{tpu_custom_call.1}
  #allocation0 [shape = 'u32[]', space=smem, size = 0x4, offset = 0x4, fixed_abs, tag = 'smem constant byte address 0x4 - core index']
  #allocation1 [shape = 'u32[144,128]{1,0:T(1,128)}', space=vmem, size = 0x12000, scoped, tag = 'internal scratch']
  %s0 = inlined_call_operand.vmem [shape: f32[2048,64], index: 0, kind: input, shape index: {}]
  %s1 = inlined_call_operand.vmem [shape: f32[1,64], index: 1, kind: input, shape index: {}]
  %s2 = inlined_call_operand.vmem [shape: f32[1,64], index: 2, kind: input, shape index: {}]
  %s3 = inlined_call_operand.vmem [shape: bf16[64,64], index: 3, kind: input, shape index: {}]
  %s4 = inlined_call_operand.vmem [shape: f32[1,64], index: 4, kind: input, shape index: {}]
  %s5 = inlined_call_operand.vmem [shape: f32[1,64], index: 5, kind: input, shape index: {}]
  %s6 = inlined_call_operand.vmem [shape: bf16[2048,64], index: 6, kind: output, shape index: {}]
  %s7 = sld [smem:[#allocation0]]
  $region57: #{tpu_custom_call.1} parent=0
    _
  %s9 = ssub.s32 1, %s7
  %s10 = scalar_select 0, %s9, %s7
  loop: start=0, step=1, limit=6
  $region2: #{tpu_custom_call.1} parent=0 // loop_pre_header
    _
  $region3: #{tpu_custom_call.1} parent=0 // loop_header
    %s12 = sphi 0, %s16
    %p13 = scmp.ge.s32.totalorder %s12, 6
    %s22 = sphi 0, %s24
    %s25 = sphi 0, %s22
    %s26 = sphi 0, %s25
    %s42 = sphi 0, %s26
    %s46 = sphi 0, %s46
    %s48 = sphi 0, %s46
    %s49 = sphi 0, %s48
    %s63 = sphi 0, %s49
    %s67 = sphi 0, %s67
    %s69 = sphi 0, %s67
    %s70 = sphi 0, %s69
    %s84 = sphi 0, %s70
    %s88 = sphi 0, %s88
    %s90 = sphi 0, %s88
    %s91 = sphi 0, %s90
    %s105 = sphi 0, %s91
    %s109 = sphi 0, %s109
    %s111 = sphi 0, %s109
    %s112 = sphi 0, %s111
    %s126 = sphi 0, %s112
    %s130 = sphi 0, %s130
    %s132 = sphi 0, %s130
    %s133 = sphi 0, %s132
    %s147 = sphi 0, %s133
    %s153 = sphi 0, %s155
    %s156 = sphi 0, %s153
    %s157 = sphi 0, %s156
    %s173 = sphi 0, %s157
  $region4: #{tpu_custom_call.1} parent=0 // loop_header_branch
    %15 = sbr.rel (%p13) target = $region8
  $region5: #{tpu_custom_call.1} parent=0 // loop_body
    %s17 = ssub.s32 %s12, 1
    %s18 = ssub.s32 %s12, 2
    %s19 = sadd.s32 %s12, 1
    %s20 = ssub.s32 %s12, %s19
    %p21 = scmp.eq.s32.totalorder %s20, 0
    %s23 = sadd.s32 %s22, 1
    %s24 = scalar_select %p21, %s22, %s23
    %p27 = pneg %p21
    %p28 = scmp.eq.s32.totalorder %s12, 3
    %p29 = por %p27, %p28
    %p30 = scmp.ne.s32.totalorder %s22, %s25
    %p31 = scmp.eq.s32.totalorder %s12, 0
    %p32 = por %p30, %p31
    %p33 = scmp.ne.s32.totalorder %s22, %s25
    %p34 = scmp.eq.s32.totalorder %s17, 3
    %p35 = por %p33, %p34
    %p36 = scmp.ne.s32.totalorder %s25, %s26
    %p37 = scmp.eq.s32.totalorder %s17, 0
    %p38 = por %p36, %p37
    %p39 = scmp.ne.s32.totalorder %s25, %s26
    %p40 = scmp.eq.s32.totalorder %s18, 3
    %p41 = por %p39, %p40
    %p43 = scmp.ne.s32.totalorder %s26, %s42
    %p44 = scmp.eq.s32.totalorder %s18, 0
    %p45 = por %p43, %p44
    %s47 = sadd.s32 %s46, 1
    %p50 = scmp.eq.s32.totalorder %s12, 3
    %p51 = scmp.ne.s32.totalorder %s46, %s48
    %p52 = scmp.eq.s32.totalorder %s12, 0
    %p53 = por %p51, %p52
    %p54 = scmp.ne.s32.totalorder %s46, %s48
    %p55 = scmp.eq.s32.totalorder %s17, 3
    %p56 = por %p54, %p55
    %p57 = scmp.ne.s32.totalorder %s48, %s49
    %p58 = scmp.eq.s32.totalorder %s17, 0
    %p59 = por %p57, %p58
    %p60 = scmp.ne.s32.totalorder %s48, %s49
    %p61 = scmp.eq.s32.totalorder %s18, 3
    %p62 = por %p60, %p61
    %p64 = scmp.ne.s32.totalorder %s49, %s63
    %p65 = scmp.eq.s32.totalorder %s18, 0
    %p66 = por %p64, %p65
    %s68 = sadd.s32 %s67, 1
    %p71 = scmp.eq.s32.totalorder %s12, 3
    %p72 = scmp.ne.s32.totalorder %s67, %s69
    %p73 = scmp.eq.s32.totalorder %s12, 0
    %p74 = por %p72, %p73
    %p75 = scmp.ne.s32.totalorder %s67, %s69
    %p76 = scmp.eq.s32.totalorder %s17, 3
    %p77 = por %p75, %p76
    %p78 = scmp.ne.s32.totalorder %s69, %s70
    %p79 = scmp.eq.s32.totalorder %s17, 0
    %p80 = por %p78, %p79
    %p81 = scmp.ne.s32.totalorder %s69, %s70
    %p82 = scmp.eq.s32.totalorder %s18, 3
    %p83 = por %p81, %p82
    %p85 = scmp.ne.s32.totalorder %s70, %s84
    %p86 = scmp.eq.s32.totalorder %s18, 0
    %p87 = por %p85, %p86
    %s89 = sadd.s32 %s88, 1
    %p92 = scmp.eq.s32.totalorder %s12, 3
    %p93 = scmp.ne.s32.totalorder %s88, %s90
    %p94 = scmp.eq.s32.totalorder %s12, 0
    %p95 = por %p93, %p94
    %p96 = scmp.ne.s32.totalorder %s88, %s90
    %p97 = scmp.eq.s32.totalorder %s17, 3
    %p98 = por %p96, %p97
    %p99 = scmp.ne.s32.totalorder %s90, %s91
    %p100 = scmp.eq.s32.totalorder %s17, 0
    %p101 = por %p99, %p100
    %p102 = scmp.ne.s32.totalorder %s90, %s91
    %p103 = scmp.eq.s32.totalorder %s18, 3
    %p104 = por %p102, %p103
    %p106 = scmp.ne.s32.totalorder %s91, %s105
    %p107 = scmp.eq.s32.totalorder %s18, 0
    %p108 = por %p106, %p107
    %s110 = sadd.s32 %s109, 1
    %p113 = scmp.eq.s32.totalorder %s12, 3
    %p114 = scmp.ne.s32.totalorder %s109, %s111
    %p115 = scmp.eq.s32.totalorder %s12, 0
    %p116 = por %p114, %p115
    %p117 = scmp.ne.s32.totalorder %s109, %s111
    %p118 = scmp.eq.s32.totalorder %s17, 3
    %p119 = por %p117, %p118
    %p120 = scmp.ne.s32.totalorder %s111, %s112
    %p121 = scmp.eq.s32.totalorder %s17, 0
    %p122 = por %p120, %p121
    %p123 = scmp.ne.s32.totalorder %s111, %s112
    %p124 = scmp.eq.s32.totalorder %s18, 3
    %p125 = por %p123, %p124
    %p127 = scmp.ne.s32.totalorder %s112, %s126
    %p128 = scmp.eq.s32.totalorder %s18, 0
    %p129 = por %p127, %p128
    %s131 = sadd.s32 %s130, 1
    %p134 = scmp.eq.s32.totalorder %s12, 3
    %p135 = scmp.ne.s32.totalorder %s130, %s132
    %p136 = scmp.eq.s32.totalorder %s12, 0
    %p137 = por %p135, %p136
    %p138 = scmp.ne.s32.totalorder %s130, %s132
    %p139 = scmp.eq.s32.totalorder %s17, 3
    %p140 = por %p138, %p139
    %p141 = scmp.ne.s32.totalorder %s132, %s133
    %p142 = scmp.eq.s32.totalorder %s17, 0
    %p143 = por %p141, %p142
    %p144 = scmp.ne.s32.totalorder %s132, %s133
    %p145 = scmp.eq.s32.totalorder %s18, 3
    %p146 = por %p144, %p145
    %p148 = scmp.ne.s32.totalorder %s133, %s147
    %p149 = scmp.eq.s32.totalorder %s18, 0
    %p150 = por %p148, %p149
    %s151 = ssub.s32 %s12, %s19
    %p152 = scmp.eq.s32.totalorder %s151, 0
    %s154 = sadd.s32 %s153, 1
    %s155 = scalar_select %p152, %s153, %s154
    %p158 = pneg %p152
    %p159 = scmp.eq.s32.totalorder %s12, 3
    %p160 = por %p158, %p159
    %p161 = scmp.ne.s32.totalorder %s153, %s156
    %p162 = scmp.eq.s32.totalorder %s12, 0
    %p163 = por %p161, %p162
    %p164 = scmp.ne.s32.totalorder %s153, %s156
    %p165 = scmp.eq.s32.totalorder %s17, 3
    %p166 = por %p164, %p165
    %p167 = scmp.ne.s32.totalorder %s156, %s157
    %p168 = scmp.eq.s32.totalorder %s17, 0
    %p169 = por %p167, %p168
    %p170 = scmp.ne.s32.totalorder %s156, %s157
    %p171 = scmp.eq.s32.totalorder %s18, 3
    %p172 = por %p170, %p171
    %p174 = scmp.ne.s32.totalorder %s157, %s173
    %p175 = scmp.eq.s32.totalorder %s18, 0
    %p176 = por %p174, %p175
    %p177 = scmp.le.s32.totalorder 1, %s12
    %p178 = scmp.lt.s32.totalorder %s12, 5
    %p179 = pnand %p177, %p178
    %p180 = pneg %p179
    // Predicated region
    $region9: #{tpu_custom_call.1} parent=5 // pred_check
      _
    $region10: #{tpu_custom_call.1} parent=5 // pred_check_branch
      %182 = sbr.rel (%p179) target = $region12
    $region11: #{tpu_custom_call.1} parent=5 // pred_region
      %s183 = ssub.s32 %s12, 1
      // Predicated region
      $region13: #{tpu_custom_call.1} parent=11 // pred_check
        %p184 = pneg %p59
      $region14: #{tpu_custom_call.1} parent=11 // pred_check_branch
        %186 = sbr.rel (%p184) target = $region16
      $region15: #{tpu_custom_call.1} parent=11 // pred_region
        _
      $region16: #{tpu_custom_call.1} parent=11 // pred_fallthru
        _
      // Predicated region
      $region17: #{tpu_custom_call.1} parent=11 // pred_check
        %p187 = pneg %p80
      $region18: #{tpu_custom_call.1} parent=11 // pred_check_branch
        %189 = sbr.rel (%p187) target = $region20
      $region19: #{tpu_custom_call.1} parent=11 // pred_region
        _
      $region20: #{tpu_custom_call.1} parent=11 // pred_fallthru
        _
      // Predicated region
      $region21: #{tpu_custom_call.1} parent=11 // pred_check
        %p190 = pneg %p101
      $region22: #{tpu_custom_call.1} parent=11 // pred_check_branch
        %192 = sbr.rel (%p190) target = $region24
      $region23: #{tpu_custom_call.1} parent=11 // pred_region
        _
      $region24: #{tpu_custom_call.1} parent=11 // pred_fallthru
        _
      // Predicated region
      $region25: #{tpu_custom_call.1} parent=11 // pred_check
        %p193 = pneg %p122
      $region26: #{tpu_custom_call.1} parent=11 // pred_check_branch
        %195 = sbr.rel (%p193) target = $region28
      $region27: #{tpu_custom_call.1} parent=11 // pred_region
        _
      $region28: #{tpu_custom_call.1} parent=11 // pred_fallthru
        _
      // Predicated region
      $region29: #{tpu_custom_call.1} parent=11 // pred_check
        %p196 = pneg %p143
      $region30: #{tpu_custom_call.1} parent=11 // pred_check_branch
        %198 = sbr.rel (%p196) target = $region32
      $region31: #{tpu_custom_call.1} parent=11 // pred_region
        _
      $region32: #{tpu_custom_call.1} parent=11 // pred_fallthru
        _
    $region12: #{tpu_custom_call.1} parent=5 // pred_fallthru
      _
    %p199 = scmp.lt.s32.totalorder %s12, 4
    // Predicated region
    $region33: #{tpu_custom_call.1} parent=5 // pred_check
      %p200 = pneg %p199
    $region34: #{tpu_custom_call.1} parent=5 // pred_check_branch
      %202 = sbr.rel (%p200) target = $region36
    $region35: #{tpu_custom_call.1} parent=5 // pred_region
      // Predicated region
      $region37: #{tpu_custom_call.1} parent=35 // pred_check
        %p203 = pneg %p32
      $region38: #{tpu_custom_call.1} parent=35 // pred_check_branch
        %205 = sbr.rel (%p203) target = $region40
      $region39: #{tpu_custom_call.1} parent=35 // pred_region
        %s206 = smul.u32 64, %s12
        %p207 = scmp.lt.s32.totalorder %s206, 255
        %s208 = scalar_select %p207, %s206, 255
        %s209 = smul.addr %s208, 8
        %s210 = scalar_lea.vmem %s0, %s209
        %s211 = smul.u32 64, %s12
      $region40: #{tpu_custom_call.1} parent=35 // pred_fallthru
        _
    $region36: #{tpu_custom_call.1} parent=5 // pred_fallthru
      _
    %p212 = scmp.le.s32.totalorder 1, %s12
    %p213 = scmp.lt.s32.totalorder %s12, 5
    %p214 = pnand %p212, %p213
    %p215 = pneg %p214
    // Predicated region
    $region41: #{tpu_custom_call.1} parent=5 // pred_check
      _
    $region42: #{tpu_custom_call.1} parent=5 // pred_check_branch
      %217 = sbr.rel (%p214) target = $region44
    $region43: #{tpu_custom_call.1} parent=5 // pred_region
      %s218 = ssub.s32 %s12, 1
      %s219 = smul.u32 64, %s17
      %p220 = scmp.lt.s32.totalorder %s219, 255
      %s221 = scalar_select %p220, %s219, 255
      %s222 = smul.addr %s221, 8
      %s223 = scalar_lea.vmem %s0, %s222
      %p224 = pneg %p38
      %p225 = pneg %p35
      %p226 = pneg %p59
      %p227 = pneg %p56
      %p228 = pneg %p80
      %p229 = pneg %p77
      %p230 = pneg %p101
      %p231 = pneg %p98
      %p232 = pneg %p122
      %p233 = pneg %p119
      %p234 = pneg %p143
      %p235 = pneg %p140
      %p236 = pneg %p169
      %p237 = pneg %p166
      %s238 = smul.u32 64, %s17
      %p239 = scmp.lt.s32.totalorder %s238, 255
      %s240 = scalar_select %p239, %s238, 255
      %s241 = smul.addr %s240, 4
      %s242 = scalar_lea.vmem %s6, %s241
      %s243 = smul.u32 64, %s17
      %p244 = scmp.lt.s32.totalorder %s243, 255
      %s245 = scalar_select %p244, %s243, 255
      %s246 = smul.addr %s245, 8
      %s247 = scalar_lea.vmem %s0, %s246
      %s248 = smul.u32 64, %s17
      %s249 = smul.u32 64, %s17
      %p250 = scmp.lt.s32.totalorder %s249, 255
      %s251 = scalar_select %p250, %s249, 255
      %s252 = smul.addr %s251, 4
      %s253 = scalar_lea.vmem %s6, %s252
      %s254 = smul.u32 64, %s17
      %v256 = vld [vmem:[%s247] sm:$0xff]
      %v257 = vld [vmem:[%s247 + $0x8] sm:$0xff]
      %v258 = vld [vmem:[%s247 + $0x10] sm:$0xff]
      %v259 = vld [vmem:[%s247 + $0x18] sm:$0xff]
      %v260 = vld [vmem:[%s247 + $0x20] sm:$0xff]
      %v261 = vld [vmem:[%s247 + $0x28] sm:$0xff]
      %v262 = vld [vmem:[%s247 + $0x30] sm:$0xff]
      %v263 = vld [vmem:[%s247 + $0x38] sm:$0xff]
      %v264 = vld [vmem:[%s247 + $0x40] sm:$0xff]
      %v265 = vld [vmem:[%s247 + $0x48] sm:$0xff]
      %v266 = vld [vmem:[%s247 + $0x50] sm:$0xff]
      %v267 = vld [vmem:[%s247 + $0x58] sm:$0xff]
      %v268 = vld [vmem:[%s247 + $0x60] sm:$0xff]
      %v269 = vld [vmem:[%s247 + $0x68] sm:$0xff]
      %v270 = vld [vmem:[%s247 + $0x70] sm:$0xff]
      %v271 = vld [vmem:[%s247 + $0x78] sm:$0xff]
      %v272 = vld [vmem:[%s247 + $0x80] sm:$0xff]
      %v273 = vld [vmem:[%s247 + $0x88] sm:$0xff]
      %v274 = vld [vmem:[%s247 + $0x90] sm:$0xff]
      %v275 = vld [vmem:[%s247 + $0x98] sm:$0xff]
      %v276 = vld [vmem:[%s247 + $0xa0] sm:$0xff]
      %v277 = vld [vmem:[%s247 + $0xa8] sm:$0xff]
      %v278 = vld [vmem:[%s247 + $0xb0] sm:$0xff]
      %v279 = vld [vmem:[%s247 + $0xb8] sm:$0xff]
      %v280 = vld [vmem:[%s247 + $0xc0] sm:$0xff]
      %v281 = vld [vmem:[%s247 + $0xc8] sm:$0xff]
      %v282 = vld [vmem:[%s247 + $0xd0] sm:$0xff]
      %v283 = vld [vmem:[%s247 + $0xd8] sm:$0xff]
      %v284 = vld [vmem:[%s247 + $0xe0] sm:$0xff]
      %v285 = vld [vmem:[%s247 + $0xe8] sm:$0xff]
      %v286 = vld [vmem:[%s247 + $0xf0] sm:$0xff]
      %v287 = vld [vmem:[%s247 + $0xf8] sm:$0xff]
      %v288 = vld [vmem:[%s247 + $0x100] sm:$0xff]
      %v289 = vld [vmem:[%s247 + $0x108] sm:$0xff]
      %v290 = vld [vmem:[%s247 + $0x110] sm:$0xff]
      %v291 = vld [vmem:[%s247 + $0x118] sm:$0xff]
      %v292 = vld [vmem:[%s247 + $0x120] sm:$0xff]
      %v293 = vld [vmem:[%s247 + $0x128] sm:$0xff]
      %v294 = vld [vmem:[%s247 + $0x130] sm:$0xff]
      %v295 = vld [vmem:[%s247 + $0x138] sm:$0xff]
      %v296 = vld [vmem:[%s247 + $0x140] sm:$0xff]
      %v297 = vld [vmem:[%s247 + $0x148] sm:$0xff]
      %v298 = vld [vmem:[%s247 + $0x150] sm:$0xff]
      %v299 = vld [vmem:[%s247 + $0x158] sm:$0xff]
      %v300 = vld [vmem:[%s247 + $0x160] sm:$0xff]
      %v301 = vld [vmem:[%s247 + $0x168] sm:$0xff]
      %v302 = vld [vmem:[%s247 + $0x170] sm:$0xff]
      %v303 = vld [vmem:[%s247 + $0x178] sm:$0xff]
      %v304 = vld [vmem:[%s247 + $0x180] sm:$0xff]
      %v305 = vld [vmem:[%s247 + $0x188] sm:$0xff]
      %v306 = vld [vmem:[%s247 + $0x190] sm:$0xff]
      %v307 = vld [vmem:[%s247 + $0x198] sm:$0xff]
      %v308 = vld [vmem:[%s247 + $0x1a0] sm:$0xff]
      %v309 = vld [vmem:[%s247 + $0x1a8] sm:$0xff]
      %v310 = vld [vmem:[%s247 + $0x1b0] sm:$0xff]
      %v311 = vld [vmem:[%s247 + $0x1b8] sm:$0xff]
      %v312 = vld [vmem:[%s247 + $0x1c0] sm:$0xff]
      %v313 = vld [vmem:[%s247 + $0x1c8] sm:$0xff]
      %v314 = vld [vmem:[%s247 + $0x1d0] sm:$0xff]
      %v315 = vld [vmem:[%s247 + $0x1d8] sm:$0xff]
      %v316 = vld [vmem:[%s247 + $0x1e0] sm:$0xff]
      %v317 = vld [vmem:[%s247 + $0x1e8] sm:$0xff]
      %v318 = vld [vmem:[%s247 + $0x1f0] sm:$0xff]
      %v319 = vld [vmem:[%s247 + $0x1f8] sm:$0xff]
      %v320 = vld [vmem:[%s1] sm:$0x1]
      %v322 = vlaneseq
      %v323 = vshrl.u32 %v322, 7
      %v324 = vsub.s32 0, %v323
      %v325 = vrot.slane %v320, %v324
      %v327 = vmul.f32 %v256, %v325
      %v328 = vmul.f32 %v257, %v325
      %v329 = vmul.f32 %v258, %v325
      %v330 = vmul.f32 %v259, %v325
      %v331 = vmul.f32 %v260, %v325
      %v332 = vmul.f32 %v261, %v325
      %v333 = vmul.f32 %v262, %v325
      %v334 = vmul.f32 %v263, %v325
      %v335 = vmul.f32 %v264, %v325
      %v336 = vmul.f32 %v265, %v325
      %v337 = vmul.f32 %v266, %v325
      %v338 = vmul.f32 %v267, %v325
      %v339 = vmul.f32 %v268, %v325
      %v340 = vmul.f32 %v269, %v325
      %v341 = vmul.f32 %v270, %v325
      %v342 = vmul.f32 %v271, %v325
      %v343 = vmul.f32 %v272, %v325
      %v344 = vmul.f32 %v273, %v325
      %v345 = vmul.f32 %v274, %v325
      %v346 = vmul.f32 %v275, %v325
      %v347 = vmul.f32 %v276, %v325
      %v348 = vmul.f32 %v277, %v325
      %v349 = vmul.f32 %v278, %v325
      %v350 = vmul.f32 %v279, %v325
      %v351 = vmul.f32 %v280, %v325
      %v352 = vmul.f32 %v281, %v325
      %v353 = vmul.f32 %v282, %v325
      %v354 = vmul.f32 %v283, %v325
      %v355 = vmul.f32 %v284, %v325
      %v356 = vmul.f32 %v285, %v325
      %v357 = vmul.f32 %v286, %v325
      %v358 = vmul.f32 %v287, %v325
      %v359 = vmul.f32 %v288, %v325
      %v360 = vmul.f32 %v289, %v325
      %v361 = vmul.f32 %v290, %v325
      %v362 = vmul.f32 %v291, %v325
      %v363 = vmul.f32 %v292, %v325
      %v364 = vmul.f32 %v293, %v325
      %v365 = vmul.f32 %v294, %v325
      %v366 = vmul.f32 %v295, %v325
      %v367 = vmul.f32 %v296, %v325
      %v368 = vmul.f32 %v297, %v325
      %v369 = vmul.f32 %v298, %v325
      %v370 = vmul.f32 %v299, %v325
      %v371 = vmul.f32 %v300, %v325
      %v372 = vmul.f32 %v301, %v325
      %v373 = vmul.f32 %v302, %v325
      %v374 = vmul.f32 %v303, %v325
      %v375 = vmul.f32 %v304, %v325
      %v376 = vmul.f32 %v305, %v325
      %v377 = vmul.f32 %v306, %v325
      %v378 = vmul.f32 %v307, %v325
      %v379 = vmul.f32 %v308, %v325
      %v380 = vmul.f32 %v309, %v325
      %v381 = vmul.f32 %v310, %v325
      %v382 = vmul.f32 %v311, %v325
      %v383 = vmul.f32 %v312, %v325
      %v384 = vmul.f32 %v313, %v325
      %v385 = vmul.f32 %v314, %v325
      %v386 = vmul.f32 %v315, %v325
      %v387 = vmul.f32 %v316, %v325
      %v388 = vmul.f32 %v317, %v325
      %v389 = vmul.f32 %v318, %v325
      %v390 = vmul.f32 %v319, %v325
      %v391 = vld [vmem:[%s2] sm:$0x1]
      %v393 = vlaneseq
      %v394 = vshrl.u32 %v393, 7
      %v395 = vsub.s32 0, %v394
      %v396 = vrot.slane %v391, %v395
      %v398 = vadd.f32 %v327, %v396
      %v399 = vadd.f32 %v328, %v396
      %v400 = vadd.f32 %v329, %v396
      %v401 = vadd.f32 %v330, %v396
      %v402 = vadd.f32 %v331, %v396
      %v403 = vadd.f32 %v332, %v396
      %v404 = vadd.f32 %v333, %v396
      %v405 = vadd.f32 %v334, %v396
      %v406 = vadd.f32 %v335, %v396
      %v407 = vadd.f32 %v336, %v396
      %v408 = vadd.f32 %v337, %v396
      %v409 = vadd.f32 %v338, %v396
      %v410 = vadd.f32 %v339, %v396
      %v411 = vadd.f32 %v340, %v396
      %v412 = vadd.f32 %v341, %v396
      %v413 = vadd.f32 %v342, %v396
      %v414 = vadd.f32 %v343, %v396
      %v415 = vadd.f32 %v344, %v396
      %v416 = vadd.f32 %v345, %v396
      %v417 = vadd.f32 %v346, %v396
      %v418 = vadd.f32 %v347, %v396
      %v419 = vadd.f32 %v348, %v396
      %v420 = vadd.f32 %v349, %v396
      %v421 = vadd.f32 %v350, %v396
      %v422 = vadd.f32 %v351, %v396
      %v423 = vadd.f32 %v352, %v396
      %v424 = vadd.f32 %v353, %v396
      %v425 = vadd.f32 %v354, %v396
      %v426 = vadd.f32 %v355, %v396
      %v427 = vadd.f32 %v356, %v396
      %v428 = vadd.f32 %v357, %v396
      %v429 = vadd.f32 %v358, %v396
      %v430 = vadd.f32 %v359, %v396
      %v431 = vadd.f32 %v360, %v396
      %v432 = vadd.f32 %v361, %v396
      %v433 = vadd.f32 %v362, %v396
      %v434 = vadd.f32 %v363, %v396
      %v435 = vadd.f32 %v364, %v396
      %v436 = vadd.f32 %v365, %v396
      %v437 = vadd.f32 %v366, %v396
      %v438 = vadd.f32 %v367, %v396
      %v439 = vadd.f32 %v368, %v396
      %v440 = vadd.f32 %v369, %v396
      %v441 = vadd.f32 %v370, %v396
      %v442 = vadd.f32 %v371, %v396
      %v443 = vadd.f32 %v372, %v396
      %v444 = vadd.f32 %v373, %v396
      %v445 = vadd.f32 %v374, %v396
      %v446 = vadd.f32 %v375, %v396
      %v447 = vadd.f32 %v376, %v396
      %v448 = vadd.f32 %v377, %v396
      %v449 = vadd.f32 %v378, %v396
      %v450 = vadd.f32 %v379, %v396
      %v451 = vadd.f32 %v380, %v396
      %v452 = vadd.f32 %v381, %v396
      %v453 = vadd.f32 %v382, %v396
      %v454 = vadd.f32 %v383, %v396
      %v455 = vadd.f32 %v384, %v396
      %v456 = vadd.f32 %v385, %v396
      %v457 = vadd.f32 %v386, %v396
      %v458 = vadd.f32 %v387, %v396
      %v459 = vadd.f32 %v388, %v396
      %v460 = vadd.f32 %v389, %v396
      %v461 = vadd.f32 %v390, %v396
      %v462 = vmax.f32 %v398, 0.0
      %v463 = vmax.f32 %v399, 0.0
      %v464 = vmax.f32 %v400, 0.0
      %v465 = vmax.f32 %v401, 0.0
      %v466 = vmax.f32 %v402, 0.0
      %v467 = vmax.f32 %v403, 0.0
      %v468 = vmax.f32 %v404, 0.0
      %v469 = vmax.f32 %v405, 0.0
      %v470 = vmax.f32 %v406, 0.0
      %v471 = vmax.f32 %v407, 0.0
      %v472 = vmax.f32 %v408, 0.0
      %v473 = vmax.f32 %v409, 0.0
      %v474 = vmax.f32 %v410, 0.0
      %v475 = vmax.f32 %v411, 0.0
      %v476 = vmax.f32 %v412, 0.0
      %v477 = vmax.f32 %v413, 0.0
      %v478 = vmax.f32 %v414, 0.0
      %v479 = vmax.f32 %v415, 0.0
      %v480 = vmax.f32 %v416, 0.0
      %v481 = vmax.f32 %v417, 0.0
      %v482 = vmax.f32 %v418, 0.0
      %v483 = vmax.f32 %v419, 0.0
      %v484 = vmax.f32 %v420, 0.0
      %v485 = vmax.f32 %v421, 0.0
      %v486 = vmax.f32 %v422, 0.0
      %v487 = vmax.f32 %v423, 0.0
      %v488 = vmax.f32 %v424, 0.0
      %v489 = vmax.f32 %v425, 0.0
      %v490 = vmax.f32 %v426, 0.0
      %v491 = vmax.f32 %v427, 0.0
      %v492 = vmax.f32 %v428, 0.0
      %v493 = vmax.f32 %v429, 0.0
      %v494 = vmax.f32 %v430, 0.0
      %v495 = vmax.f32 %v431, 0.0
      %v496 = vmax.f32 %v432, 0.0
      %v497 = vmax.f32 %v433, 0.0
      %v498 = vmax.f32 %v434, 0.0
      %v499 = vmax.f32 %v435, 0.0
      %v500 = vmax.f32 %v436, 0.0
      %v501 = vmax.f32 %v437, 0.0
      %v502 = vmax.f32 %v438, 0.0
      %v503 = vmax.f32 %v439, 0.0
      %v504 = vmax.f32 %v440, 0.0
      %v505 = vmax.f32 %v441, 0.0
      %v506 = vmax.f32 %v442, 0.0
      %v507 = vmax.f32 %v443, 0.0
      %v508 = vmax.f32 %v444, 0.0
      %v509 = vmax.f32 %v445, 0.0
      %v510 = vmax.f32 %v446, 0.0
      %v511 = vmax.f32 %v447, 0.0
      %v512 = vmax.f32 %v448, 0.0
      %v513 = vmax.f32 %v449, 0.0
      %v514 = vmax.f32 %v450, 0.0
      %v515 = vmax.f32 %v451, 0.0
      %v516 = vmax.f32 %v452, 0.0
      %v517 = vmax.f32 %v453, 0.0
      %v518 = vmax.f32 %v454, 0.0
      %v519 = vmax.f32 %v455, 0.0
      %v520 = vmax.f32 %v456, 0.0
      %v521 = vmax.f32 %v457, 0.0
      %v522 = vmax.f32 %v458, 0.0
      %v523 = vmax.f32 %v459, 0.0
      %v524 = vmax.f32 %v460, 0.0
      %v525 = vmax.f32 %v461, 0.0
      %v526 = vpack.c.bf16 %v463, %v462
      %v527 = vpack.c.bf16 %v465, %v464
      %v528 = vpack.c.bf16 %v467, %v466
      %v529 = vpack.c.bf16 %v469, %v468
      %v530 = vpack.c.bf16 %v471, %v470
      %v531 = vpack.c.bf16 %v473, %v472
      %v532 = vpack.c.bf16 %v475, %v474
      %v533 = vpack.c.bf16 %v477, %v476
      %v534 = vpack.c.bf16 %v479, %v478
      %v535 = vpack.c.bf16 %v481, %v480
      %v536 = vpack.c.bf16 %v483, %v482
      %v537 = vpack.c.bf16 %v485, %v484
      %v538 = vpack.c.bf16 %v487, %v486
      %v539 = vpack.c.bf16 %v489, %v488
      %v540 = vpack.c.bf16 %v491, %v490
      %v541 = vpack.c.bf16 %v493, %v492
      %v542 = vpack.c.bf16 %v495, %v494
      %v543 = vpack.c.bf16 %v497, %v496
      %v544 = vpack.c.bf16 %v499, %v498
      %v545 = vpack.c.bf16 %v501, %v500
      %v546 = vpack.c.bf16 %v503, %v502
      %v547 = vpack.c.bf16 %v505, %v504
      %v548 = vpack.c.bf16 %v507, %v506
      %v549 = vpack.c.bf16 %v509, %v508
      %v550 = vpack.c.bf16 %v511, %v510
      %v551 = vpack.c.bf16 %v513, %v512
      %v552 = vpack.c.bf16 %v515, %v514
      %v553 = vpack.c.bf16 %v517, %v516
      %v554 = vpack.c.bf16 %v519, %v518
      %v555 = vpack.c.bf16 %v521, %v520
      %v556 = vpack.c.bf16 %v523, %v522
      %v557 = vpack.c.bf16 %v525, %v524
      %v558 = vld [vmem:[%s3] sm:$0xf]
      %v559 = vld [vmem:[%s3 + $0x4] sm:$0xf]
      %v560 = vld [vmem:[%s3 + $0x8] sm:$0xf]
      %v561 = vld [vmem:[%s3 + $0xc] sm:$0xf]
      %v562 = vld [vmem:[%s3 + $0x10] sm:$0xf]
      %v563 = vld [vmem:[%s3 + $0x14] sm:$0xf]
      %v564 = vld [vmem:[%s3 + $0x18] sm:$0xf]
      %v565 = vld [vmem:[%s3 + $0x1c] sm:$0xf]
      %v574 = vunpack.c.l.b16 %v558
      %v575 = vunpack.c.l.b16 %v559
      %v576 = vunpack.c.l.b16 %v560
      %v577 = vunpack.c.l.b16 %v561
      %v578 = vunpack.c.l.b16 %v562
      %v579 = vunpack.c.l.b16 %v563
      %v580 = vunpack.c.l.b16 %v564
      %v581 = vunpack.c.l.b16 %v565
      %v582 = vpack.c.b16 %v575, %v574
      %v583 = vpack.c.b16 %v577, %v576
      %v584 = vpack.c.b16 %v579, %v578
      %v585 = vpack.c.b16 %v581, %v580
      %vm590 = vcmask 523264
      %v592 = vsel %vm590, %v526, 0
      %v595 = vsel %vm590, %v527, 0
      %v598 = vsel %vm590, %v528, 0
      %v601 = vsel %vm590, %v529, 0
      %v604 = vsel %vm590, %v530, 0
      %v607 = vsel %vm590, %v531, 0
      %v610 = vsel %vm590, %v532, 0
      %v613 = vsel %vm590, %v533, 0
      %v616 = vsel %vm590, %v534, 0
      %v619 = vsel %vm590, %v535, 0
      %v622 = vsel %vm590, %v536, 0
      %v625 = vsel %vm590, %v537, 0
      %v628 = vsel %vm590, %v538, 0
      %v631 = vsel %vm590, %v539, 0
      %v634 = vsel %vm590, %v540, 0
      %v637 = vsel %vm590, %v541, 0
      %v640 = vsel %vm590, %v542, 0
      %v643 = vsel %vm590, %v543, 0
      %v646 = vsel %vm590, %v544, 0
      %v649 = vsel %vm590, %v545, 0
      %v652 = vsel %vm590, %v546, 0
      %v655 = vsel %vm590, %v547, 0
      %v658 = vsel %vm590, %v548, 0
      %v661 = vsel %vm590, %v549, 0
      %v664 = vsel %vm590, %v550, 0
      %v667 = vsel %vm590, %v551, 0
      %v670 = vsel %vm590, %v552, 0
      %v673 = vsel %vm590, %v553, 0
      %v676 = vsel %vm590, %v554, 0
      %v679 = vsel %vm590, %v555, 0
      %v682 = vsel %vm590, %v556, 0
      %v685 = vsel %vm590, %v557, 0
      %687 = vmatprep.subr.bf16.mxu0 0
      %688 = vmatpush1.bf16.msra.mxu0 0
      %689 = vmatprep.subr.bf16.mxu0 0
      %690 = vmatpush1.bf16.msra.mxu0 0
      %691 = vmatprep.subr.bf16.mxu0 0
      %692 = vmatpush1.bf16.msra.mxu0 0
      %693 = vmatprep.subr.bf16.mxu0 0
      %694 = vmatpush1.bf16.msra.mxu0 0
      %695 = vmatprep.subr.bf16.mxu0 0
      %696 = vmatpush1.bf16.msra.mxu0 %v585
      %697 = vmatprep.subr.bf16.mxu0 0
      %698 = vmatpush1.bf16.msra.mxu0 %v584
      %699 = vmatprep.subr.bf16.mxu0 0
      %700 = vmatpush1.bf16.msra.mxu0 %v583
      %701 = vmatprep.subr.bf16.mxu0 0
      %702 = vmatpush1.bf16.msra.mxu0 %v582
      %703 = vmatprep.subr.bf16.mxu0 0
      %704 = vmatpush2.bf16.msra.mxu0 0
      %705 = vmatprep.subr.bf16.mxu0 0
      %706 = vmatpush2.bf16.msra.mxu0 0
      %707 = vmatprep.subr.bf16.mxu0 0
      %708 = vmatpush2.bf16.msra.mxu0 0
      %709 = vmatprep.subr.bf16.mxu0 0
      %710 = vmatpush2.bf16.msra.mxu0 0
      %711 = vmatprep.subr.bf16.mxu0 0
      %712 = vmatpush2.bf16.msra.mxu0 0
      %713 = vmatprep.subr.bf16.mxu0 0
      %714 = vmatpush2.bf16.msra.mxu0 0
      %715 = vmatprep.subr.bf16.mxu0 0
      %716 = vmatpush2.bf16.msra.mxu0 0
      %717 = vmatprep.subr.bf16.mxu0 0
      %718 = vmatpush2.bf16.msra.mxu0 0
      %719 = vmatprep.mubr.bf16.mxu0 0
      %720 = vmatmul.mubr.bf16.gmra.mxu0 %v592
      %v721 = vpop.f32.mrf.mxu0
      %v722 = vadd.f32 0.0, %v721
      %v723 = vpop.f32.mrf.mxu0
      %v724 = vpop.f32.mrf.mxu0
      %v725 = vadd.f32 0.0, %v724
      %v726 = vpop.f32.mrf.mxu0
      %727 = vmatprep.mubr.bf16.mxu0 0
      %728 = vmatmul.mubr.bf16.gmra.mxu0 %v595
      %v729 = vpop.f32.mrf.mxu0
      %v730 = vadd.f32 0.0, %v729
      %v731 = vpop.f32.mrf.mxu0
      %v732 = vpop.f32.mrf.mxu0
      %v733 = vadd.f32 0.0, %v732
      %v734 = vpop.f32.mrf.mxu0
      %735 = vmatprep.mubr.bf16.mxu0 0
      %736 = vmatmul.mubr.bf16.gmra.mxu0 %v598
      %v737 = vpop.f32.mrf.mxu0
      %v738 = vadd.f32 0.0, %v737
      %v739 = vpop.f32.mrf.mxu0
      %v740 = vpop.f32.mrf.mxu0
      %v741 = vadd.f32 0.0, %v740
      %v742 = vpop.f32.mrf.mxu0
      %743 = vmatprep.mubr.bf16.mxu0 0
      %744 = vmatmul.mubr.bf16.gmra.mxu0 %v601
      %v745 = vpop.f32.mrf.mxu0
      %v746 = vadd.f32 0.0, %v745
      %v747 = vpop.f32.mrf.mxu0
      %v748 = vpop.f32.mrf.mxu0
      %v749 = vadd.f32 0.0, %v748
      %v750 = vpop.f32.mrf.mxu0
      %751 = vmatprep.mubr.bf16.mxu0 0
      %752 = vmatmul.mubr.bf16.gmra.mxu0 %v604
      %v753 = vpop.f32.mrf.mxu0
      %v754 = vadd.f32 0.0, %v753
      %v755 = vpop.f32.mrf.mxu0
      %v756 = vpop.f32.mrf.mxu0
      %v757 = vadd.f32 0.0, %v756
      %v758 = vpop.f32.mrf.mxu0
      %759 = vmatprep.mubr.bf16.mxu0 0
      %760 = vmatmul.mubr.bf16.gmra.mxu0 %v607
      %v761 = vpop.f32.mrf.mxu0
      %v762 = vadd.f32 0.0, %v761
      %v763 = vpop.f32.mrf.mxu0
      %v764 = vpop.f32.mrf.mxu0
      %v765 = vadd.f32 0.0, %v764
      %v766 = vpop.f32.mrf.mxu0
      %767 = vmatprep.mubr.bf16.mxu0 0
      %768 = vmatmul.mubr.bf16.gmra.mxu0 %v610
      %v769 = vpop.f32.mrf.mxu0
      %v770 = vadd.f32 0.0, %v769
      %v771 = vpop.f32.mrf.mxu0
      %v772 = vpop.f32.mrf.mxu0
      %v773 = vadd.f32 0.0, %v772
      %v774 = vpop.f32.mrf.mxu0
      %775 = vmatprep.mubr.bf16.mxu0 0
      %776 = vmatmul.mubr.bf16.gmra.mxu0 %v613
      %v777 = vpop.f32.mrf.mxu0
      %v778 = vadd.f32 0.0, %v777
      %v779 = vpop.f32.mrf.mxu0
      %v780 = vpop.f32.mrf.mxu0
      %v781 = vadd.f32 0.0, %v780
      %v782 = vpop.f32.mrf.mxu0
      %783 = vmatprep.mubr.bf16.mxu0 0
      %784 = vmatmul.mubr.bf16.gmra.mxu0 %v616
      %v785 = vpop.f32.mrf.mxu0
      %v786 = vadd.f32 0.0, %v785
      %v787 = vpop.f32.mrf.mxu0
      %v788 = vpop.f32.mrf.mxu0
      %v789 = vadd.f32 0.0, %v788
      %v790 = vpop.f32.mrf.mxu0
      %791 = vmatprep.mubr.bf16.mxu0 0
      %792 = vmatmul.mubr.bf16.gmra.mxu0 %v619
      %v793 = vpop.f32.mrf.mxu0
      %v794 = vadd.f32 0.0, %v793
      %v795 = vpop.f32.mrf.mxu0
      %v796 = vpop.f32.mrf.mxu0
      %v797 = vadd.f32 0.0, %v796
      %v798 = vpop.f32.mrf.mxu0
      %799 = vmatprep.mubr.bf16.mxu0 0
      %800 = vmatmul.mubr.bf16.gmra.mxu0 %v622
      %v801 = vpop.f32.mrf.mxu0
      %v802 = vadd.f32 0.0, %v801
      %v803 = vpop.f32.mrf.mxu0
      %v804 = vpop.f32.mrf.mxu0
      %v805 = vadd.f32 0.0, %v804
      %v806 = vpop.f32.mrf.mxu0
      %807 = vmatprep.mubr.bf16.mxu0 0
      %808 = vmatmul.mubr.bf16.gmra.mxu0 %v625
      %v809 = vpop.f32.mrf.mxu0
      %v810 = vadd.f32 0.0, %v809
      %v811 = vpop.f32.mrf.mxu0
      %v812 = vpop.f32.mrf.mxu0
      %v813 = vadd.f32 0.0, %v812
      %v814 = vpop.f32.mrf.mxu0
      %815 = vmatprep.mubr.bf16.mxu0 0
      %816 = vmatmul.mubr.bf16.gmra.mxu0 %v628
      %v817 = vpop.f32.mrf.mxu0
      %v818 = vadd.f32 0.0, %v817
      %v819 = vpop.f32.mrf.mxu0
      %v820 = vpop.f32.mrf.mxu0
      %v821 = vadd.f32 0.0, %v820
      %v822 = vpop.f32.mrf.mxu0
      %823 = vmatprep.mubr.bf16.mxu0 0
      %824 = vmatmul.mubr.bf16.gmra.mxu0 %v631
      %v825 = vpop.f32.mrf.mxu0
      %v826 = vadd.f32 0.0, %v825
      %v827 = vpop.f32.mrf.mxu0
      %v828 = vpop.f32.mrf.mxu0
      %v829 = vadd.f32 0.0, %v828
      %v830 = vpop.f32.mrf.mxu0
      %831 = vmatprep.mubr.bf16.mxu0 0
      %832 = vmatmul.mubr.bf16.gmra.mxu0 %v634
      %v833 = vpop.f32.mrf.mxu0
      %v834 = vadd.f32 0.0, %v833
      %v835 = vpop.f32.mrf.mxu0
      %v836 = vpop.f32.mrf.mxu0
      %v837 = vadd.f32 0.0, %v836
      %v838 = vpop.f32.mrf.mxu0
      %839 = vmatprep.mubr.bf16.mxu0 0
      %840 = vmatmul.mubr.bf16.gmra.mxu0 %v637
      %v841 = vpop.f32.mrf.mxu0
      %v842 = vadd.f32 0.0, %v841
      %v843 = vpop.f32.mrf.mxu0
      %v844 = vpop.f32.mrf.mxu0
      %v845 = vadd.f32 0.0, %v844
      %v846 = vpop.f32.mrf.mxu0
      %847 = vmatprep.mubr.bf16.mxu0 0
      %848 = vmatmul.mubr.bf16.gmra.mxu0 %v640
      %v849 = vpop.f32.mrf.mxu0
      %v850 = vadd.f32 0.0, %v849
      %v851 = vpop.f32.mrf.mxu0
      %v852 = vpop.f32.mrf.mxu0
      %v853 = vadd.f32 0.0, %v852
      %v854 = vpop.f32.mrf.mxu0
      %855 = vmatprep.mubr.bf16.mxu0 0
      %856 = vmatmul.mubr.bf16.gmra.mxu0 %v643
      %v857 = vpop.f32.mrf.mxu0
      %v858 = vadd.f32 0.0, %v857
      %v859 = vpop.f32.mrf.mxu0
      %v860 = vpop.f32.mrf.mxu0
      %v861 = vadd.f32 0.0, %v860
      %v862 = vpop.f32.mrf.mxu0
      %863 = vmatprep.mubr.bf16.mxu0 0
      %864 = vmatmul.mubr.bf16.gmra.mxu0 %v646
      %v865 = vpop.f32.mrf.mxu0
      %v866 = vadd.f32 0.0, %v865
      %v867 = vpop.f32.mrf.mxu0
      %v868 = vpop.f32.mrf.mxu0
      %v869 = vadd.f32 0.0, %v868
      %v870 = vpop.f32.mrf.mxu0
      %871 = vmatprep.mubr.bf16.mxu0 0
      %872 = vmatmul.mubr.bf16.gmra.mxu0 %v649
      %v873 = vpop.f32.mrf.mxu0
      %v874 = vadd.f32 0.0, %v873
      %v875 = vpop.f32.mrf.mxu0
      %v876 = vpop.f32.mrf.mxu0
      %v877 = vadd.f32 0.0, %v876
      %v878 = vpop.f32.mrf.mxu0
      %879 = vmatprep.mubr.bf16.mxu0 0
      %880 = vmatmul.mubr.bf16.gmra.mxu0 %v652
      %v881 = vpop.f32.mrf.mxu0
      %v882 = vadd.f32 0.0, %v881
      %v883 = vpop.f32.mrf.mxu0
      %v884 = vpop.f32.mrf.mxu0
      %v885 = vadd.f32 0.0, %v884
      %v886 = vpop.f32.mrf.mxu0
      %887 = vmatprep.mubr.bf16.mxu0 0
      %888 = vmatmul.mubr.bf16.gmra.mxu0 %v655
      %v889 = vpop.f32.mrf.mxu0
      %v890 = vadd.f32 0.0, %v889
      %v891 = vpop.f32.mrf.mxu0
      %v892 = vpop.f32.mrf.mxu0
      %v893 = vadd.f32 0.0, %v892
      %v894 = vpop.f32.mrf.mxu0
      %895 = vmatprep.mubr.bf16.mxu0 0
      %896 = vmatmul.mubr.bf16.gmra.mxu0 %v658
      %v897 = vpop.f32.mrf.mxu0
      %v898 = vadd.f32 0.0, %v897
      %v899 = vpop.f32.mrf.mxu0
      %v900 = vpop.f32.mrf.mxu0
      %v901 = vadd.f32 0.0, %v900
      %v902 = vpop.f32.mrf.mxu0
      %903 = vmatprep.mubr.bf16.mxu0 0
      %904 = vmatmul.mubr.bf16.gmra.mxu0 %v661
      %v905 = vpop.f32.mrf.mxu0
      %v906 = vadd.f32 0.0, %v905
      %v907 = vpop.f32.mrf.mxu0
      %v908 = vpop.f32.mrf.mxu0
      %v909 = vadd.f32 0.0, %v908
      %v910 = vpop.f32.mrf.mxu0
      %911 = vmatprep.mubr.bf16.mxu0 0
      %912 = vmatmul.mubr.bf16.gmra.mxu0 %v664
      %v913 = vpop.f32.mrf.mxu0
      %v914 = vadd.f32 0.0, %v913
      %v915 = vpop.f32.mrf.mxu0
      %v916 = vpop.f32.mrf.mxu0
      %v917 = vadd.f32 0.0, %v916
      %v918 = vpop.f32.mrf.mxu0
      %919 = vmatprep.mubr.bf16.mxu0 0
      %920 = vmatmul.mubr.bf16.gmra.mxu0 %v667
      %v921 = vpop.f32.mrf.mxu0
      %v922 = vadd.f32 0.0, %v921
      %v923 = vpop.f32.mrf.mxu0
      %v924 = vpop.f32.mrf.mxu0
      %v925 = vadd.f32 0.0, %v924
      %v926 = vpop.f32.mrf.mxu0
      %927 = vmatprep.mubr.bf16.mxu0 0
      %928 = vmatmul.mubr.bf16.gmra.mxu0 %v670
      %v929 = vpop.f32.mrf.mxu0
      %v930 = vadd.f32 0.0, %v929
      %v931 = vpop.f32.mrf.mxu0
      %v932 = vpop.f32.mrf.mxu0
      %v933 = vadd.f32 0.0, %v932
      %v934 = vpop.f32.mrf.mxu0
      %935 = vmatprep.mubr.bf16.mxu0 0
      %936 = vmatmul.mubr.bf16.gmra.mxu0 %v673
      %v937 = vpop.f32.mrf.mxu0
      %v938 = vadd.f32 0.0, %v937
      %v939 = vpop.f32.mrf.mxu0
      %v940 = vpop.f32.mrf.mxu0
      %v941 = vadd.f32 0.0, %v940
      %v942 = vpop.f32.mrf.mxu0
      %943 = vmatprep.mubr.bf16.mxu0 0
      %944 = vmatmul.mubr.bf16.gmra.mxu0 %v676
      %v945 = vpop.f32.mrf.mxu0
      %v946 = vadd.f32 0.0, %v945
      %v947 = vpop.f32.mrf.mxu0
      %v948 = vpop.f32.mrf.mxu0
      %v949 = vadd.f32 0.0, %v948
      %v950 = vpop.f32.mrf.mxu0
      %951 = vmatprep.mubr.bf16.mxu0 0
      %952 = vmatmul.mubr.bf16.gmra.mxu0 %v679
      %v953 = vpop.f32.mrf.mxu0
      %v954 = vadd.f32 0.0, %v953
      %v955 = vpop.f32.mrf.mxu0
      %v956 = vpop.f32.mrf.mxu0
      %v957 = vadd.f32 0.0, %v956
      %v958 = vpop.f32.mrf.mxu0
      %959 = vmatprep.mubr.bf16.mxu0 0
      %960 = vmatmul.mubr.bf16.gmra.mxu0 %v682
      %v961 = vpop.f32.mrf.mxu0
      %v962 = vadd.f32 0.0, %v961
      %v963 = vpop.f32.mrf.mxu0
      %v964 = vpop.f32.mrf.mxu0
      %v965 = vadd.f32 0.0, %v964
      %v966 = vpop.f32.mrf.mxu0
      %967 = vmatprep.mubr.bf16.mxu0 0
      %968 = vmatmul.mubr.bf16.gmra.mxu0 %v685
      %v969 = vpop.f32.mrf.mxu0
      %v970 = vadd.f32 0.0, %v969
      %v971 = vpop.f32.mrf.mxu0
      %v972 = vpop.f32.mrf.mxu0
      %v973 = vadd.f32 0.0, %v972
      %v974 = vpop.f32.mrf.mxu0
      %975 = vdwg.mxu0
      %v976 = vld [vmem:[%s4] sm:$0x1]
      %v978 = vlaneseq
      %v979 = vshrl.u32 %v978, 7
      %v980 = vsub.s32 0, %v979
      %v981 = vrot.slane %v976, %v980
      %v983 = vmul.f32 %v722, %v981
      %v984 = vmul.f32 %v725, %v981
      %v985 = vmul.f32 %v730, %v981
      %v986 = vmul.f32 %v733, %v981
      %v987 = vmul.f32 %v738, %v981
      %v988 = vmul.f32 %v741, %v981
      %v989 = vmul.f32 %v746, %v981
      %v990 = vmul.f32 %v749, %v981
      %v991 = vmul.f32 %v754, %v981
      %v992 = vmul.f32 %v757, %v981
      %v993 = vmul.f32 %v762, %v981
      %v994 = vmul.f32 %v765, %v981
      %v995 = vmul.f32 %v770, %v981
      %v996 = vmul.f32 %v773, %v981
      %v997 = vmul.f32 %v778, %v981
      %v998 = vmul.f32 %v781, %v981
      %v999 = vmul.f32 %v786, %v981
      %v1000 = vmul.f32 %v789, %v981
      %v1001 = vmul.f32 %v794, %v981
      %v1002 = vmul.f32 %v797, %v981
      %v1003 = vmul.f32 %v802, %v981
      %v1004 = vmul.f32 %v805, %v981
      %v1005 = vmul.f32 %v810, %v981
      %v1006 = vmul.f32 %v813, %v981
      %v1007 = vmul.f32 %v818, %v981
      %v1008 = vmul.f32 %v821, %v981
      %v1009 = vmul.f32 %v826, %v981
      %v1010 = vmul.f32 %v829, %v981
      %v1011 = vmul.f32 %v834, %v981
      %v1012 = vmul.f32 %v837, %v981
      %v1013 = vmul.f32 %v842, %v981
      %v1014 = vmul.f32 %v845, %v981
      %v1015 = vmul.f32 %v850, %v981
      %v1016 = vmul.f32 %v853, %v981
      %v1017 = vmul.f32 %v858, %v981
      %v1018 = vmul.f32 %v861, %v981
      %v1019 = vmul.f32 %v866, %v981
      %v1020 = vmul.f32 %v869, %v981
      %v1021 = vmul.f32 %v874, %v981
      %v1022 = vmul.f32 %v877, %v981
      %v1023 = vmul.f32 %v882, %v981
      %v1024 = vmul.f32 %v885, %v981
      %v1025 = vmul.f32 %v890, %v981
      %v1026 = vmul.f32 %v893, %v981
      %v1027 = vmul.f32 %v898, %v981
      %v1028 = vmul.f32 %v901, %v981
      %v1029 = vmul.f32 %v906, %v981
      %v1030 = vmul.f32 %v909, %v981
      %v1031 = vmul.f32 %v914, %v981
      %v1032 = vmul.f32 %v917, %v981
      %v1033 = vmul.f32 %v922, %v981
      %v1034 = vmul.f32 %v925, %v981
      %v1035 = vmul.f32 %v930, %v981
      %v1036 = vmul.f32 %v933, %v981
      %v1037 = vmul.f32 %v938, %v981
      %v1038 = vmul.f32 %v941, %v981
      %v1039 = vmul.f32 %v946, %v981
      %v1040 = vmul.f32 %v949, %v981
      %v1041 = vmul.f32 %v954, %v981
      %v1042 = vmul.f32 %v957, %v981
      %v1043 = vmul.f32 %v962, %v981
      %v1044 = vmul.f32 %v965, %v981
      %v1045 = vmul.f32 %v970, %v981
      %v1046 = vmul.f32 %v973, %v981
      %v1047 = vld [vmem:[%s5] sm:$0x1]
      %v1049 = vlaneseq
      %v1050 = vshrl.u32 %v1049, 7
      %v1051 = vsub.s32 0, %v1050
      %v1052 = vrot.slane %v1047, %v1051
      %v1054 = vadd.f32 %v983, %v1052
      %v1055 = vadd.f32 %v984, %v1052
      %v1056 = vadd.f32 %v985, %v1052
      %v1057 = vadd.f32 %v986, %v1052
      %v1058 = vadd.f32 %v987, %v1052
      %v1059 = vadd.f32 %v988, %v1052
      %v1060 = vadd.f32 %v989, %v1052
      %v1061 = vadd.f32 %v990, %v1052
      %v1062 = vadd.f32 %v991, %v1052
      %v1063 = vadd.f32 %v992, %v1052
      %v1064 = vadd.f32 %v993, %v1052
      %v1065 = vadd.f32 %v994, %v1052
      %v1066 = vadd.f32 %v995, %v1052
      %v1067 = vadd.f32 %v996, %v1052
      %v1068 = vadd.f32 %v997, %v1052
      %v1069 = vadd.f32 %v998, %v1052
      %v1070 = vadd.f32 %v999, %v1052
      %v1071 = vadd.f32 %v1000, %v1052
      %v1072 = vadd.f32 %v1001, %v1052
      %v1073 = vadd.f32 %v1002, %v1052
      %v1074 = vadd.f32 %v1003, %v1052
      %v1075 = vadd.f32 %v1004, %v1052
      %v1076 = vadd.f32 %v1005, %v1052
      %v1077 = vadd.f32 %v1006, %v1052
      %v1078 = vadd.f32 %v1007, %v1052
      %v1079 = vadd.f32 %v1008, %v1052
      %v1080 = vadd.f32 %v1009, %v1052
      %v1081 = vadd.f32 %v1010, %v1052
      %v1082 = vadd.f32 %v1011, %v1052
      %v1083 = vadd.f32 %v1012, %v1052
      %v1084 = vadd.f32 %v1013, %v1052
      %v1085 = vadd.f32 %v1014, %v1052
      %v1086 = vadd.f32 %v1015, %v1052
      %v1087 = vadd.f32 %v1016, %v1052
      %v1088 = vadd.f32 %v1017, %v1052
      %v1089 = vadd.f32 %v1018, %v1052
      %v1090 = vadd.f32 %v1019, %v1052
      %v1091 = vadd.f32 %v1020, %v1052
      %v1092 = vadd.f32 %v1021, %v1052
      %v1093 = vadd.f32 %v1022, %v1052
      %v1094 = vadd.f32 %v1023, %v1052
      %v1095 = vadd.f32 %v1024, %v1052
      %v1096 = vadd.f32 %v1025, %v1052
      %v1097 = vadd.f32 %v1026, %v1052
      %v1098 = vadd.f32 %v1027, %v1052
      %v1099 = vadd.f32 %v1028, %v1052
      %v1100 = vadd.f32 %v1029, %v1052
      %v1101 = vadd.f32 %v1030, %v1052
      %v1102 = vadd.f32 %v1031, %v1052
      %v1103 = vadd.f32 %v1032, %v1052
      %v1104 = vadd.f32 %v1033, %v1052
      %v1105 = vadd.f32 %v1034, %v1052
      %v1106 = vadd.f32 %v1035, %v1052
      %v1107 = vadd.f32 %v1036, %v1052
      %v1108 = vadd.f32 %v1037, %v1052
      %v1109 = vadd.f32 %v1038, %v1052
      %v1110 = vadd.f32 %v1039, %v1052
      %v1111 = vadd.f32 %v1040, %v1052
      %v1112 = vadd.f32 %v1041, %v1052
      %v1113 = vadd.f32 %v1042, %v1052
      %v1114 = vadd.f32 %v1043, %v1052
      %v1115 = vadd.f32 %v1044, %v1052
      %v1116 = vadd.f32 %v1045, %v1052
      %v1117 = vadd.f32 %v1046, %v1052
      %v1118 = vmax.f32 %v1054, 0.0
      %v1119 = vmax.f32 %v1055, 0.0
      %v1120 = vmax.f32 %v1056, 0.0
      %v1121 = vmax.f32 %v1057, 0.0
      %v1122 = vmax.f32 %v1058, 0.0
      %v1123 = vmax.f32 %v1059, 0.0
      %v1124 = vmax.f32 %v1060, 0.0
      %v1125 = vmax.f32 %v1061, 0.0
      %v1126 = vmax.f32 %v1062, 0.0
      %v1127 = vmax.f32 %v1063, 0.0
      %v1128 = vmax.f32 %v1064, 0.0
      %v1129 = vmax.f32 %v1065, 0.0
      %v1130 = vmax.f32 %v1066, 0.0
      %v1131 = vmax.f32 %v1067, 0.0
      %v1132 = vmax.f32 %v1068, 0.0
      %v1133 = vmax.f32 %v1069, 0.0
      %v1134 = vmax.f32 %v1070, 0.0
      %v1135 = vmax.f32 %v1071, 0.0
      %v1136 = vmax.f32 %v1072, 0.0
      %v1137 = vmax.f32 %v1073, 0.0
      %v1138 = vmax.f32 %v1074, 0.0
      %v1139 = vmax.f32 %v1075, 0.0
      %v1140 = vmax.f32 %v1076, 0.0
      %v1141 = vmax.f32 %v1077, 0.0
      %v1142 = vmax.f32 %v1078, 0.0
      %v1143 = vmax.f32 %v1079, 0.0
      %v1144 = vmax.f32 %v1080, 0.0
      %v1145 = vmax.f32 %v1081, 0.0
      %v1146 = vmax.f32 %v1082, 0.0
      %v1147 = vmax.f32 %v1083, 0.0
      %v1148 = vmax.f32 %v1084, 0.0
      %v1149 = vmax.f32 %v1085, 0.0
      %v1150 = vmax.f32 %v1086, 0.0
      %v1151 = vmax.f32 %v1087, 0.0
      %v1152 = vmax.f32 %v1088, 0.0
      %v1153 = vmax.f32 %v1089, 0.0
      %v1154 = vmax.f32 %v1090, 0.0
      %v1155 = vmax.f32 %v1091, 0.0
      %v1156 = vmax.f32 %v1092, 0.0
      %v1157 = vmax.f32 %v1093, 0.0
      %v1158 = vmax.f32 %v1094, 0.0
      %v1159 = vmax.f32 %v1095, 0.0
      %v1160 = vmax.f32 %v1096, 0.0
      %v1161 = vmax.f32 %v1097, 0.0
      %v1162 = vmax.f32 %v1098, 0.0
      %v1163 = vmax.f32 %v1099, 0.0
      %v1164 = vmax.f32 %v1100, 0.0
      %v1165 = vmax.f32 %v1101, 0.0
      %v1166 = vmax.f32 %v1102, 0.0
      %v1167 = vmax.f32 %v1103, 0.0
      %v1168 = vmax.f32 %v1104, 0.0
      %v1169 = vmax.f32 %v1105, 0.0
      %v1170 = vmax.f32 %v1106, 0.0
      %v1171 = vmax.f32 %v1107, 0.0
      %v1172 = vmax.f32 %v1108, 0.0
      %v1173 = vmax.f32 %v1109, 0.0
      %v1174 = vmax.f32 %v1110, 0.0
      %v1175 = vmax.f32 %v1111, 0.0
      %v1176 = vmax.f32 %v1112, 0.0
      %v1177 = vmax.f32 %v1113, 0.0
      %v1178 = vmax.f32 %v1114, 0.0
      %v1179 = vmax.f32 %v1115, 0.0
      %v1180 = vmax.f32 %v1116, 0.0
      %v1181 = vmax.f32 %v1117, 0.0
      %v1182 = vpack.c.bf16 %v1119, %v1118
      %v1183 = vpack.c.bf16 %v1121, %v1120
      %v1184 = vpack.c.bf16 %v1123, %v1122
      %v1185 = vpack.c.bf16 %v1125, %v1124
      %v1186 = vpack.c.bf16 %v1127, %v1126
      %v1187 = vpack.c.bf16 %v1129, %v1128
      %v1188 = vpack.c.bf16 %v1131, %v1130
      %v1189 = vpack.c.bf16 %v1133, %v1132
      %v1190 = vpack.c.bf16 %v1135, %v1134
      %v1191 = vpack.c.bf16 %v1137, %v1136
      %v1192 = vpack.c.bf16 %v1139, %v1138
      %v1193 = vpack.c.bf16 %v1141, %v1140
      %v1194 = vpack.c.bf16 %v1143, %v1142
      %v1195 = vpack.c.bf16 %v1145, %v1144
      %v1196 = vpack.c.bf16 %v1147, %v1146
      %v1197 = vpack.c.bf16 %v1149, %v1148
      %v1198 = vpack.c.bf16 %v1151, %v1150
      %v1199 = vpack.c.bf16 %v1153, %v1152
      %v1200 = vpack.c.bf16 %v1155, %v1154
      %v1201 = vpack.c.bf16 %v1157, %v1156
      %v1202 = vpack.c.bf16 %v1159, %v1158
      %v1203 = vpack.c.bf16 %v1161, %v1160
      %v1204 = vpack.c.bf16 %v1163, %v1162
      %v1205 = vpack.c.bf16 %v1165, %v1164
      %v1206 = vpack.c.bf16 %v1167, %v1166
      %v1207 = vpack.c.bf16 %v1169, %v1168
      %v1208 = vpack.c.bf16 %v1171, %v1170
      %v1209 = vpack.c.bf16 %v1173, %v1172
      %v1210 = vpack.c.bf16 %v1175, %v1174
      %v1211 = vpack.c.bf16 %v1177, %v1176
      %v1212 = vpack.c.bf16 %v1179, %v1178
      %v1213 = vpack.c.bf16 %v1181, %v1180
      %v1246 = vunpack.c.l.b16 %v1182
      %v1247 = vunpack.c.h.b16 %v1182
      %v1248 = vunpack.c.l.b16 %v1183
      %v1249 = vunpack.c.h.b16 %v1183
      %v1250 = vunpack.c.l.b16 %v1184
      %v1251 = vunpack.c.h.b16 %v1184
      %v1252 = vunpack.c.l.b16 %v1185
      %v1253 = vunpack.c.h.b16 %v1185
      %v1254 = vunpack.c.l.b16 %v1186
      %v1255 = vunpack.c.h.b16 %v1186
      %v1256 = vunpack.c.l.b16 %v1187
      %v1257 = vunpack.c.h.b16 %v1187
      %v1258 = vunpack.c.l.b16 %v1188
      %v1259 = vunpack.c.h.b16 %v1188
      %v1260 = vunpack.c.l.b16 %v1189
      %v1261 = vunpack.c.h.b16 %v1189
      %v1262 = vunpack.c.l.b16 %v1190
      %v1263 = vunpack.c.h.b16 %v1190
      %v1264 = vunpack.c.l.b16 %v1191
      %v1265 = vunpack.c.h.b16 %v1191
      %v1266 = vunpack.c.l.b16 %v1192
      %v1267 = vunpack.c.h.b16 %v1192
      %v1268 = vunpack.c.l.b16 %v1193
      %v1269 = vunpack.c.h.b16 %v1193
      %v1270 = vunpack.c.l.b16 %v1194
      %v1271 = vunpack.c.h.b16 %v1194
      %v1272 = vunpack.c.l.b16 %v1195
      %v1273 = vunpack.c.h.b16 %v1195
      %v1274 = vunpack.c.l.b16 %v1196
      %v1275 = vunpack.c.h.b16 %v1196
      %v1276 = vunpack.c.l.b16 %v1197
      %v1277 = vunpack.c.h.b16 %v1197
      %v1278 = vunpack.c.l.b16 %v1198
      %v1279 = vunpack.c.h.b16 %v1198
      %v1280 = vunpack.c.l.b16 %v1199
      %v1281 = vunpack.c.h.b16 %v1199
      %v1282 = vunpack.c.l.b16 %v1200
      %v1283 = vunpack.c.h.b16 %v1200
      %v1284 = vunpack.c.l.b16 %v1201
      %v1285 = vunpack.c.h.b16 %v1201
      %v1286 = vunpack.c.l.b16 %v1202
      %v1287 = vunpack.c.h.b16 %v1202
      %v1288 = vunpack.c.l.b16 %v1203
      %v1289 = vunpack.c.h.b16 %v1203
      %v1290 = vunpack.c.l.b16 %v1204
      %v1291 = vunpack.c.h.b16 %v1204
      %v1292 = vunpack.c.l.b16 %v1205
      %v1293 = vunpack.c.h.b16 %v1205
      %v1294 = vunpack.c.l.b16 %v1206
      %v1295 = vunpack.c.h.b16 %v1206
      %v1296 = vunpack.c.l.b16 %v1207
      %v1297 = vunpack.c.h.b16 %v1207
      %v1298 = vunpack.c.l.b16 %v1208
      %v1299 = vunpack.c.h.b16 %v1208
      %v1300 = vunpack.c.l.b16 %v1209
      %v1301 = vunpack.c.h.b16 %v1209
      %v1302 = vunpack.c.l.b16 %v1210
      %v1303 = vunpack.c.h.b16 %v1210
      %v1304 = vunpack.c.l.b16 %v1211
      %v1305 = vunpack.c.h.b16 %v1211
      %v1306 = vunpack.c.l.b16 %v1212
      %v1307 = vunpack.c.h.b16 %v1212
      %v1308 = vunpack.c.l.b16 %v1213
      %v1309 = vunpack.c.h.b16 %v1213
      %v1310 = vpack.c.b16 %v1246, %v1246
      %v1311 = vpack.c.b16 %v1247, %v1247
      %v1312 = vpack.c.b16 %v1248, %v1248
      %v1313 = vpack.c.b16 %v1249, %v1249
      %v1314 = vpack.c.b16 %v1250, %v1250
      %v1315 = vpack.c.b16 %v1251, %v1251
      %v1316 = vpack.c.b16 %v1252, %v1252
      %v1317 = vpack.c.b16 %v1253, %v1253
      %v1318 = vpack.c.b16 %v1254, %v1254
      %v1319 = vpack.c.b16 %v1255, %v1255
      %v1320 = vpack.c.b16 %v1256, %v1256
      %v1321 = vpack.c.b16 %v1257, %v1257
      %v1322 = vpack.c.b16 %v1258, %v1258
      %v1323 = vpack.c.b16 %v1259, %v1259
      %v1324 = vpack.c.b16 %v1260, %v1260
      %v1325 = vpack.c.b16 %v1261, %v1261
      %v1326 = vpack.c.b16 %v1262, %v1262
      %v1327 = vpack.c.b16 %v1263, %v1263
      %v1328 = vpack.c.b16 %v1264, %v1264
      %v1329 = vpack.c.b16 %v1265, %v1265
      %v1330 = vpack.c.b16 %v1266, %v1266
      %v1331 = vpack.c.b16 %v1267, %v1267
      %v1332 = vpack.c.b16 %v1268, %v1268
      %v1333 = vpack.c.b16 %v1269, %v1269
      %v1334 = vpack.c.b16 %v1270, %v1270
      %v1335 = vpack.c.b16 %v1271, %v1271
      %v1336 = vpack.c.b16 %v1272, %v1272
      %v1337 = vpack.c.b16 %v1273, %v1273
      %v1338 = vpack.c.b16 %v1274, %v1274
      %v1339 = vpack.c.b16 %v1275, %v1275
      %v1340 = vpack.c.b16 %v1276, %v1276
      %v1341 = vpack.c.b16 %v1277, %v1277
      %v1342 = vpack.c.b16 %v1278, %v1278
      %v1343 = vpack.c.b16 %v1279, %v1279
      %v1344 = vpack.c.b16 %v1280, %v1280
      %v1345 = vpack.c.b16 %v1281, %v1281
      %v1346 = vpack.c.b16 %v1282, %v1282
      %v1347 = vpack.c.b16 %v1283, %v1283
      %v1348 = vpack.c.b16 %v1284, %v1284
      %v1349 = vpack.c.b16 %v1285, %v1285
      %v1350 = vpack.c.b16 %v1286, %v1286
      %v1351 = vpack.c.b16 %v1287, %v1287
      %v1352 = vpack.c.b16 %v1288, %v1288
      %v1353 = vpack.c.b16 %v1289, %v1289
      %v1354 = vpack.c.b16 %v1290, %v1290
      %v1355 = vpack.c.b16 %v1291, %v1291
      %v1356 = vpack.c.b16 %v1292, %v1292
      %v1357 = vpack.c.b16 %v1293, %v1293
      %v1358 = vpack.c.b16 %v1294, %v1294
      %v1359 = vpack.c.b16 %v1295, %v1295
      %v1360 = vpack.c.b16 %v1296, %v1296
      %v1361 = vpack.c.b16 %v1297, %v1297
      %v1362 = vpack.c.b16 %v1298, %v1298
      %v1363 = vpack.c.b16 %v1299, %v1299
      %v1364 = vpack.c.b16 %v1300, %v1300
      %v1365 = vpack.c.b16 %v1301, %v1301
      %v1366 = vpack.c.b16 %v1302, %v1302
      %v1367 = vpack.c.b16 %v1303, %v1303
      %v1368 = vpack.c.b16 %v1304, %v1304
      %v1369 = vpack.c.b16 %v1305, %v1305
      %v1370 = vpack.c.b16 %v1306, %v1306
      %v1371 = vpack.c.b16 %v1307, %v1307
      %v1372 = vpack.c.b16 %v1308, %v1308
      %v1373 = vpack.c.b16 %v1309, %v1309
      %vm1438 = vcmask 519168
      %1439 = vst.msk [vmem:[%s253] sm:$0xf] %vm1438, %v1310
      %1440 = vst.msk [vmem:[%s253 + $0x4] sm:$0xf] %vm1438, %v1311
      %1441 = vst.msk [vmem:[%s253 + $0x8] sm:$0xf] %vm1438, %v1312
      %1442 = vst.msk [vmem:[%s253 + $0xc] sm:$0xf] %vm1438, %v1313
      %1443 = vst.msk [vmem:[%s253 + $0x10] sm:$0xf] %vm1438, %v1314
      %1444 = vst.msk [vmem:[%s253 + $0x14] sm:$0xf] %vm1438, %v1315
      %1445 = vst.msk [vmem:[%s253 + $0x18] sm:$0xf] %vm1438, %v1316
      %1446 = vst.msk [vmem:[%s253 + $0x1c] sm:$0xf] %vm1438, %v1317
      %1447 = vst.msk [vmem:[%s253 + $0x20] sm:$0xf] %vm1438, %v1318
      %1448 = vst.msk [vmem:[%s253 + $0x24] sm:$0xf] %vm1438, %v1319
      %1449 = vst.msk [vmem:[%s253 + $0x28] sm:$0xf] %vm1438, %v1320
      %1450 = vst.msk [vmem:[%s253 + $0x2c] sm:$0xf] %vm1438, %v1321
      %1451 = vst.msk [vmem:[%s253 + $0x30] sm:$0xf] %vm1438, %v1322
      %1452 = vst.msk [vmem:[%s253 + $0x34] sm:$0xf] %vm1438, %v1323
      %1453 = vst.msk [vmem:[%s253 + $0x38] sm:$0xf] %vm1438, %v1324
      %1454 = vst.msk [vmem:[%s253 + $0x3c] sm:$0xf] %vm1438, %v1325
      %1455 = vst.msk [vmem:[%s253 + $0x40] sm:$0xf] %vm1438, %v1326
      %1456 = vst.msk [vmem:[%s253 + $0x44] sm:$0xf] %vm1438, %v1327
      %1457 = vst.msk [vmem:[%s253 + $0x48] sm:$0xf] %vm1438, %v1328
      %1458 = vst.msk [vmem:[%s253 + $0x4c] sm:$0xf] %vm1438, %v1329
      %1459 = vst.msk [vmem:[%s253 + $0x50] sm:$0xf] %vm1438, %v1330
      %1460 = vst.msk [vmem:[%s253 + $0x54] sm:$0xf] %vm1438, %v1331
      %1461 = vst.msk [vmem:[%s253 + $0x58] sm:$0xf] %vm1438, %v1332
      %1462 = vst.msk [vmem:[%s253 + $0x5c] sm:$0xf] %vm1438, %v1333
      %1463 = vst.msk [vmem:[%s253 + $0x60] sm:$0xf] %vm1438, %v1334
      %1464 = vst.msk [vmem:[%s253 + $0x64] sm:$0xf] %vm1438, %v1335
      %1465 = vst.msk [vmem:[%s253 + $0x68] sm:$0xf] %vm1438, %v1336
      %1466 = vst.msk [vmem:[%s253 + $0x6c] sm:$0xf] %vm1438, %v1337
      %1467 = vst.msk [vmem:[%s253 + $0x70] sm:$0xf] %vm1438, %v1338
      %1468 = vst.msk [vmem:[%s253 + $0x74] sm:$0xf] %vm1438, %v1339
      %1469 = vst.msk [vmem:[%s253 + $0x78] sm:$0xf] %vm1438, %v1340
      %1470 = vst.msk [vmem:[%s253 + $0x7c] sm:$0xf] %vm1438, %v1341
      %1471 = vst.msk [vmem:[%s253 + $0x80] sm:$0xf] %vm1438, %v1342
      %1472 = vst.msk [vmem:[%s253 + $0x84] sm:$0xf] %vm1438, %v1343
      %1473 = vst.msk [vmem:[%s253 + $0x88] sm:$0xf] %vm1438, %v1344
      %1474 = vst.msk [vmem:[%s253 + $0x8c] sm:$0xf] %vm1438, %v1345
      %1475 = vst.msk [vmem:[%s253 + $0x90] sm:$0xf] %vm1438, %v1346
      %1476 = vst.msk [vmem:[%s253 + $0x94] sm:$0xf] %vm1438, %v1347
      %1477 = vst.msk [vmem:[%s253 + $0x98] sm:$0xf] %vm1438, %v1348
      %1478 = vst.msk [vmem:[%s253 + $0x9c] sm:$0xf] %vm1438, %v1349
      %1479 = vst.msk [vmem:[%s253 + $0xa0] sm:$0xf] %vm1438, %v1350
      %1480 = vst.msk [vmem:[%s253 + $0xa4] sm:$0xf] %vm1438, %v1351
      %1481 = vst.msk [vmem:[%s253 + $0xa8] sm:$0xf] %vm1438, %v1352
      %1482 = vst.msk [vmem:[%s253 + $0xac] sm:$0xf] %vm1438, %v1353
      %1483 = vst.msk [vmem:[%s253 + $0xb0] sm:$0xf] %vm1438, %v1354
      %1484 = vst.msk [vmem:[%s253 + $0xb4] sm:$0xf] %vm1438, %v1355
      %1485 = vst.msk [vmem:[%s253 + $0xb8] sm:$0xf] %vm1438, %v1356
      %1486 = vst.msk [vmem:[%s253 + $0xbc] sm:$0xf] %vm1438, %v1357
      %1487 = vst.msk [vmem:[%s253 + $0xc0] sm:$0xf] %vm1438, %v1358
      %1488 = vst.msk [vmem:[%s253 + $0xc4] sm:$0xf] %vm1438, %v1359
      %1489 = vst.msk [vmem:[%s253 + $0xc8] sm:$0xf] %vm1438, %v1360
      %1490 = vst.msk [vmem:[%s253 + $0xcc] sm:$0xf] %vm1438, %v1361
      %1491 = vst.msk [vmem:[%s253 + $0xd0] sm:$0xf] %vm1438, %v1362
      %1492 = vst.msk [vmem:[%s253 + $0xd4] sm:$0xf] %vm1438, %v1363
      %1493 = vst.msk [vmem:[%s253 + $0xd8] sm:$0xf] %vm1438, %v1364
      %1494 = vst.msk [vmem:[%s253 + $0xdc] sm:$0xf] %vm1438, %v1365
      %1495 = vst.msk [vmem:[%s253 + $0xe0] sm:$0xf] %vm1438, %v1366
      %1496 = vst.msk [vmem:[%s253 + $0xe4] sm:$0xf] %vm1438, %v1367
      %1497 = vst.msk [vmem:[%s253 + $0xe8] sm:$0xf] %vm1438, %v1368
      %1498 = vst.msk [vmem:[%s253 + $0xec] sm:$0xf] %vm1438, %v1369
      %1499 = vst.msk [vmem:[%s253 + $0xf0] sm:$0xf] %vm1438, %v1370
      %1500 = vst.msk [vmem:[%s253 + $0xf4] sm:$0xf] %vm1438, %v1371
      %1501 = vst.msk [vmem:[%s253 + $0xf8] sm:$0xf] %vm1438, %v1372
      %1502 = vst.msk [vmem:[%s253 + $0xfc] sm:$0xf] %vm1438, %v1373
      %s1503 = smul.u32 64, %s17
      %p1504 = scmp.lt.s32.totalorder %s1503, 255
      %s1505 = scalar_select %p1504, %s1503, 255
      %s1506 = smul.addr %s1505, 4
      %s1507 = scalar_lea.vmem %s6, %s1506
      // Predicated region
      $region45: #{tpu_custom_call.1} parent=43 // pred_check
        %p1508 = pneg %p166
      $region46: #{tpu_custom_call.1} parent=43 // pred_check_branch
        %1510 = sbr.rel (%p1508) target = $region48
      $region47: #{tpu_custom_call.1} parent=43 // pred_region
        %s1511 = smul.u32 64, %s17
      $region48: #{tpu_custom_call.1} parent=43 // pred_fallthru
        _
    $region44: #{tpu_custom_call.1} parent=5 // pred_fallthru
      _
    %p1512 = scmp.le.s32.totalorder 2, %s12
    // Predicated region
    $region49: #{tpu_custom_call.1} parent=5 // pred_check
      %p1513 = pneg %p1512
    $region50: #{tpu_custom_call.1} parent=5 // pred_check_branch
      %1515 = sbr.rel (%p1513) target = $region52
    $region51: #{tpu_custom_call.1} parent=5 // pred_region
      %s1516 = ssub.s32 %s12, 2
      // Predicated region
      $region53: #{tpu_custom_call.1} parent=51 // pred_check
        %p1517 = pneg %p172
      $region54: #{tpu_custom_call.1} parent=51 // pred_check_branch
        %1519 = sbr.rel (%p1517) target = $region56
      $region55: #{tpu_custom_call.1} parent=51 // pred_region
        %s1520 = smul.u32 64, %s18
        %p1521 = scmp.lt.s32.totalorder %s1520, 255
        %s1522 = scalar_select %p1521, %s1520, 255
        %s1523 = smul.addr %s1522, 4
        %s1524 = scalar_lea.vmem %s6, %s1523
      $region56: #{tpu_custom_call.1} parent=51 // pred_fallthru
        _
    $region52: #{tpu_custom_call.1} parent=5 // pred_fallthru
      _
  $region6: #{tpu_custom_call.1} parent=0 // loop_footer
    %s16 = sadd.s32 1, %s12
  $region7: #{tpu_custom_call.1} parent=0 // loop_footer_branch
    %11 = sbr.rel target = $region3
  $region8: #{tpu_custom_call.1} parent=0 // loop_exit
    _

</llo_original>
